<compile_context>
chip_gen: v7x
topology: tpu7x:2x2x1
jax: 0.10.0
libtpu: 0.0.40
codegen_flags: <defaults>
</compile_context>

<pallas_src>
import jax
import jax.numpy as jnp
import numpy as np
from jax.experimental import pallas as pl
from jax.experimental.pallas import tpu as pltpu

# ----------------------------- configuration --------------------------------
N_NODES = 16       # nodes per graph
F0 = 8             # node_feature_num
N_MOTIFS = 3       # number of motif edge lists
F1 = 16            # args.gcn_filters[-1]
S_POOL = 4         # weighted_avg_graph_size (super nodes)
D_SUPER = 8        # args.Super_Node_Dim
PRI_CAP_NUM = 8    # args.Pri_Cap_Num
CAP_DIM = 8        # args.capsule_dimensions
N_CLASS_CAPS = 3   # args.Class_Capsule_Num
N_ROUTE = S_POOL * PRI_CAP_NUM          # 32 primary-capsule routes
ROUTING_ITERS = 3

MN = N_MOTIFS * N_NODES                 # 48  motif-batched sublane extent
MD = N_MOTIFS * D_SUPER                 # 24  concatenated DiffPool lanes
PC = PRI_CAP_NUM * CAP_DIM              # 64  primary-capsule lane width
CD = N_CLASS_CAPS * CAP_DIM             # 24  class-capsule lane width
RK = N_ROUTE * CAP_DIM                  # 256 routing contraction width
OUT_LANES = 128                         # lane-dense output row per graph


# ------------------------ host-built constant masks --------------------------
def _build_masks():
    f32 = np.float32
    p = np.arange(PC)
    g64 = (p[:, None] // CAP_DIM == p[None, :] // CAP_DIM).astype(f32)         # (64,64)
    c = np.arange(CD)
    g24 = (c[:, None] // CAP_DIM == c[None, :] // CAP_DIM).astype(f32)         # (24,24)
    expand = (c[None, :] // CAP_DIM ==
              np.arange(N_CLASS_CAPS)[:, None]).astype(f32)                    # (3,24)
    collapse = (c[:, None] // CAP_DIM ==
                np.arange(N_CLASS_CAPS)[None, :]).astype(f32)                  # (24,3)
    r = np.arange(N_ROUTE)
    sel = (np.arange(S_POOL)[None, :] == r[:, None] // PRI_CAP_NUM).astype(f32)  # (32,4)
    k = np.arange(RK)
    xmask = (k[None, :] // CAP_DIM == r[:, None]).astype(f32)                  # (32,256)
    zr, zc = np.arange(MN), np.arange(MD)
    zmask = (zr[:, None] // N_NODES == zc[None, :] // D_SUPER).astype(f32)     # (48,24)
    return dict(g64=g64, g24=g24, expand=expand, collapse=collapse,
                sel=sel, xmask=xmask, zmask=zmask)


_MASKS = _build_masks()


# ------------------------------ fused kernel ---------------------------------
def _fused_forward_kernel(feat_ref, motif_ref, adjb_ref,
                          w_gcn_ref, w_emb_ref, w_asn_ref, w_pc_ref, b_pc_ref,
                          w_route_ref,
                          g64_ref, zmask_ref, sel_ref, xmask_ref,
                          expand_ref, collapse_ref, g24_ref,
                          out_ref):
    f32 = jnp.float32
    feat = feat_ref[0]                                                         # (N, F0)
    motif = motif_ref[0]                                                       # (M*N, N)
    adj_blk = adjb_ref[0]                                                      # (M*N, M*N) block-diag

    # ---- Motif GCN: motif batch folded into the sublane axis (one matmul) ---
    xw = jnp.dot(feat, w_gcn_ref[...], preferred_element_type=f32)             # (N, F1)
    h_all = jnp.maximum(
        jnp.dot(motif, xw, preferred_element_type=f32), 0.0)                   # (M*N, F1)

    # ---- BatchedDiffPool: all motifs at once via block-diagonal adjacency ---
    ax = jnp.dot(adj_blk, h_all, preferred_element_type=f32)                   # (M*N, F1)
    z = jnp.maximum(
        jnp.dot(ax, w_emb_ref[...], preferred_element_type=f32), 0.0)          # (M*N, Ds)
    sl = jnp.dot(ax, w_asn_ref[...], preferred_element_type=f32)               # (M*N, S)
    sl = sl - jnp.max(sl, axis=-1, keepdims=True)
    es = jnp.exp(sl)
    s_asn = es * pl.reciprocal(jnp.sum(es, axis=-1, keepdims=True), approx=True)

    # nf_cat[p, m*Ds+d] = (S_m^T Z_m)[p, d] -- a single transposed contraction
    # over the block-diagonal Z; folds the reference permute(1,0,2)+reshape.
    z_blk = jnp.concatenate([z, z, z], axis=1) * zmask_ref[...]                # (M*N, M*Ds)
    nf_cat = jax.lax.dot_general(
        s_asn, z_blk, dimension_numbers=(((0,), (0,)), ((), ())),
        preferred_element_type=f32)                                            # (S, M*Ds)

    # ---- primary capsules: one linear map + squash per 8-lane capsule -------
    u = jnp.dot(nf_cat, w_pc_ref[...], preferred_element_type=f32) + b_pc_ref[...]  # (S, P*Cd)
    sq = jnp.dot(u * u, g64_ref[...], preferred_element_type=f32)              # group |.|^2 per lane
    pri = (u * (sq * pl.reciprocal(1.0 + sq, approx=True))
           * jax.lax.rsqrt(sq + 1e-9))                                         # (S, P*Cd)

    # ---- routing priors u_hat: lane-tile + block-diag mask (no tilemat) -----
    rep = jnp.dot(sel_ref[...], pri, preferred_element_type=f32)               # (R, P*Cd): row r = pri[r//P]
    x_exp = jnp.concatenate([rep, rep, rep, rep], axis=1) * xmask_ref[...]     # (R, R*Cd) block-diag
    u_hat = jnp.dot(x_exp, w_route_ref[...], preferred_element_type=f32)       # (R, C*Cd)

    expand = expand_ref[...]
    collapse = collapse_ref[...]
    g24 = g24_ref[...]

    def squash(s):
        ss = jnp.dot(s * s, g24, preferred_element_type=f32)                   # per-lane |s_c|^2
        return (s * (ss * pl.reciprocal(1.0 + ss, approx=True))
                * jax.lax.rsqrt(ss + 1e-9))

    # ---- dynamic routing, 3 iterations ---------------------------------------
    # iteration 0: logits == 0 -> probs uniform (1/C), skip its softmax.
    s = jnp.sum(u_hat, axis=0, keepdims=True) * (1.0 / N_CLASS_CAPS)           # (1, C*Cd)
    v = squash(s)
    logits = jnp.dot(u_hat * v, collapse, preferred_element_type=f32)          # (R, C)

    for it in range(1, ROUTING_ITERS):
        lmax = jnp.max(logits, axis=-1, keepdims=True)
        le = jnp.exp(logits - lmax)
        probs = le * pl.reciprocal(jnp.sum(le, axis=-1, keepdims=True), approx=True)
        pe = jnp.dot(probs, expand, preferred_element_type=f32)                # (R, C*Cd)
        s = jnp.sum(pe * u_hat, axis=0, keepdims=True)                         # (1, C*Cd)
        v = squash(s)
        if it < ROUTING_ITERS - 1:        # final logits update is dead work
            logits = logits + jnp.dot(u_hat * v, collapse,
                                      preferred_element_type=f32)

    # lane-dense writeback: pad to 128 lanes, one unmasked row per graph.
    out_ref[0] = jnp.concatenate(
        [v, jnp.zeros((1, OUT_LANES - CD), f32)], axis=1)


# ------------------------------ params ---------------------------------------
def init_params(key):
    ks = jax.random.split(key, 6)

    def norm(k, shape, fan_in):
        return jax.random.normal(k, shape, jnp.float32) / jnp.sqrt(fan_in)

    return {
        "w_gcn": norm(ks[0], (F0, F1), F0),
        "w_embed": norm(ks[1], (F1, D_SUPER), F1),
        "w_assign": norm(ks[2], (F1, S_POOL), F1),
        # rows ordered (motif, super-dim): folds permute(1,0,2)+reshape of the
        # DiffPool output into the kernel's lane-concatenated nf_cat.
        "w_pc": norm(ks[3], (MD, PC), MD),
        "b_pc": 0.01 * jax.random.normal(ks[4], (1, PC), jnp.float32),
        # routing weights stored lane-dense:
        #   w_route[r*Cd + d_in, c*Cd + d_out] == canonical W[c, r, d_in, d_out]
        "w_route": norm(ks[5], (RK, CD), CAP_DIM),
    }


# ------------------------------ kernel wrapper --------------------------------
def _run_kernel(params, feature_b, motif_b, adj_b):
    """feature_b (B,N,F0), motif_b (B,M,N,N), adj_b (B,M,N,N) -> caps (B,C,Cd)."""
    B = feature_b.shape[0]
    motif_flat = motif_b.reshape(B, MN, N_NODES)
    # host-built block-diagonal pooled adjacency (B, M*N, M*N), ~9 KiB/graph.
    eye_m = jnp.eye(N_MOTIFS, dtype=jnp.float32)
    adj_blk = jnp.einsum('bmij,mn->bminj', adj_b, eye_m).reshape(B, MN, MN)

    def graph_spec(rows, cols):
        return pl.BlockSpec((1, rows, cols), lambda i: (i, 0, 0))

    def const_spec(shape):
        return pl.BlockSpec(shape, lambda i: (0, 0))   # resident across grid

    out = pl.pallas_call(
        _fused_forward_kernel,
        out_shape=jax.ShapeDtypeStruct((B, 1, OUT_LANES), jnp.float32),
        grid=(B,),
        in_specs=[
            graph_spec(N_NODES, F0),                    # feature
            graph_spec(MN, N_NODES),                    # motif adjacency (flat)
            graph_spec(MN, MN),                         # block-diag pooled adjacency
            const_spec((F0, F1)),                       # w_gcn
            const_spec((F1, D_SUPER)),                  # w_embed
            const_spec((F1, S_POOL)),                   # w_assign
            const_spec((MD, PC)),                       # w_pc
            const_spec((1, PC)),                        # b_pc
            const_spec((RK, CD)),                       # w_route (lane-dense)
            const_spec((PC, PC)),                       # g64
            const_spec((MN, MD)),                       # zmask
            const_spec((N_ROUTE, S_POOL)),              # sel
            const_spec((N_ROUTE, RK)),                  # xmask
            const_spec((N_CLASS_CAPS, CD)),             # expand
            const_spec((CD, N_CLASS_CAPS)),             # collapse
            const_spec((CD, CD)),                       # g24
        ],
        out_specs=pl.BlockSpec((1, 1, OUT_LANES), lambda i: (i, 0, 0)),
        compiler_params=pltpu.CompilerParams(
            dimension_semantics=("parallel",)),
    )(feature_b, motif_flat, adj_blk,
      params["w_gcn"], params["w_embed"], params["w_assign"],
      params["w_pc"], params["b_pc"], params["w_route"],
      _MASKS["g64"], _MASKS["zmask"], _MASKS["sel"], _MASKS["xmask"],
      _MASKS["expand"], _MASKS["collapse"], _MASKS["g24"])

    return out[:, 0, :CD].reshape(B, N_CLASS_CAPS, CAP_DIM)


# ------------------------------ full forward ---------------------------------
def motif_aware_capnn_forward(params, feature, motif_adj, adj_batched, core_adj):
    """Single graph (original module semantics). Returns (caps (C,Cd), loss, recon)."""
    caps = _run_kernel(params, feature[None], motif_adj[None], adj_batched[None])[0]
    # TODO(synk): reconstruction_layers / My_reconstruction_layers are not
    # defined in the reference module; only the args.Use_Recon == False path
    # is implemented.
    recon_loss = jnp.float32(0.0)
    recon = core_adj
    return caps, recon_loss, recon


def motif_aware_capnn_forward_batched(params, feature_b, motif_b, adj_b, core_adj):
    """Batched graphs: one pallas_call, grid=(B,) 'parallel'."""
    caps = _run_kernel(params, feature_b, motif_b, adj_b)
    return caps, jnp.float32(0.0), core_adj


# --------------------------------- driver ------------------------------------
def _make_adjacency(key, prefix, n):
    """Random symmetric {0,1} adjacency + self-loops, row-normalized."""
    a = (jax.random.uniform(key, prefix + (n, n)) > 0.6).astype(jnp.float32)
    a = jnp.maximum(a, jnp.swapaxes(a, -1, -2))
    a = jnp.minimum(a + jnp.eye(n, dtype=jnp.float32), 1.0)
    deg = jnp.sum(a, axis=-1, keepdims=True)
    return a / deg


if __name__ == "__main__":
    key = jax.random.PRNGKey(0)
    k_par, k_feat, k_motif, k_adj, k_core = jax.random.split(key, 5)

    B = 8
    params = init_params(k_par)
    feature = jax.random.normal(k_feat, (B, N_NODES, F0), jnp.float32)
    motif_adj = _make_adjacency(k_motif, (B, N_MOTIFS), N_NODES)     # "edge lists"
    adj_batched = _make_adjacency(k_adj, (B, N_MOTIFS), N_NODES)     # adj_matrix list
    core_adj = (jax.random.uniform(k_core, (N_NODES, N_NODES)) > 0.5
                ).astype(jnp.float32)

    fwd_batch = jax.jit(motif_aware_capnn_forward_batched)
    caps_b, loss_b, recon_b = fwd_batch(params, feature, motif_adj,
                                        adj_batched, core_adj)
    caps_b = jax.block_until_ready(caps_b)

    fwd_single = jax.jit(motif_aware_capnn_forward)
    caps_1, loss_1, recon_1 = fwd_single(params, feature[0], motif_adj[0],
                                         adj_batched[0], core_adj)
    caps_1 = jax.block_until_ready(caps_1)

    assert caps_b.shape == (B, N_CLASS_CAPS, CAP_DIM)
    assert caps_1.shape == (N_CLASS_CAPS, CAP_DIM)
    assert bool(jnp.all(jnp.isfinite(caps_b)))
    assert bool(jnp.all(jnp.isfinite(caps_1)))
    assert bool(jnp.allclose(caps_b[0], caps_1, atol=1e-5))
    assert recon_b.shape == (N_NODES, N_NODES)
    print("KERNEL_OK")
</pallas_src>

<mosaic_0001>
module attributes {stable_mosaic.version = 11 : i64} {
  func.func @_fused_forward_kernel(%arg0: i32, %arg1: memref<1x16x8xf32, #tpu.memory_space<vmem>>, %arg2: memref<1x48x16xf32, #tpu.memory_space<vmem>>, %arg3: memref<1x48x48xf32, #tpu.memory_space<vmem>>, %arg4: memref<8x16xf32, #tpu.memory_space<vmem>>, %arg5: memref<16x8xf32, #tpu.memory_space<vmem>>, %arg6: memref<16x4xf32, #tpu.memory_space<vmem>>, %arg7: memref<24x64xf32, #tpu.memory_space<vmem>>, %arg8: memref<1x64xf32, #tpu.memory_space<vmem>>, %arg9: memref<256x24xf32, #tpu.memory_space<vmem>>, %arg10: memref<64x64xf32, #tpu.memory_space<vmem>>, %arg11: memref<48x24xf32, #tpu.memory_space<vmem>>, %arg12: memref<32x4xf32, #tpu.memory_space<vmem>>, %arg13: memref<32x256xf32, #tpu.memory_space<vmem>>, %arg14: memref<3x24xf32, #tpu.memory_space<vmem>>, %arg15: memref<24x3xf32, #tpu.memory_space<vmem>>, %arg16: memref<24x24xf32, #tpu.memory_space<vmem>>, %arg17: memref<1x1x128xf32, #tpu.memory_space<vmem>>) attributes {dimension_semantics = [#tpu.dimension_semantics<parallel>], iteration_bounds = array<i64: 8>, scalar_prefetch = 0 : i64, scratch_operands = 0 : i64, tpu.core_type = #tpu.core_type<tc>, window_params = [{transform_indices = @transform_0, window_bounds = array<i64: 1, 16, 8>}, {transform_indices = @transform_1, window_bounds = array<i64: 1, 48, 16>}, {transform_indices = @transform_2, window_bounds = array<i64: 1, 48, 48>}, {pipeline_mode = #tpu.pipeline_mode<synchronous>, transform_indices = @transform_3, window_bounds = array<i64: 8, 16>}, {pipeline_mode = #tpu.pipeline_mode<synchronous>, transform_indices = @transform_4, window_bounds = array<i64: 16, 8>}, {pipeline_mode = #tpu.pipeline_mode<synchronous>, transform_indices = @transform_5, window_bounds = array<i64: 16, 4>}, {pipeline_mode = #tpu.pipeline_mode<synchronous>, transform_indices = @transform_6, window_bounds = array<i64: 24, 64>}, {pipeline_mode = #tpu.pipeline_mode<synchronous>, transform_indices = @transform_7, window_bounds = array<i64: 1, 64>}, {pipeline_mode = #tpu.pipeline_mode<synchronous>, transform_indices = @transform_8, window_bounds = array<i64: 256, 24>}, {pipeline_mode = #tpu.pipeline_mode<synchronous>, transform_indices = @transform_9, window_bounds = array<i64: 64, 64>}, {pipeline_mode = #tpu.pipeline_mode<synchronous>, transform_indices = @transform_10, window_bounds = array<i64: 48, 24>}, {pipeline_mode = #tpu.pipeline_mode<synchronous>, transform_indices = @transform_11, window_bounds = array<i64: 32, 4>}, {pipeline_mode = #tpu.pipeline_mode<synchronous>, transform_indices = @transform_12, window_bounds = array<i64: 32, 256>}, {pipeline_mode = #tpu.pipeline_mode<synchronous>, transform_indices = @transform_13, window_bounds = array<i64: 3, 24>}, {pipeline_mode = #tpu.pipeline_mode<synchronous>, transform_indices = @transform_14, window_bounds = array<i64: 24, 3>}, {pipeline_mode = #tpu.pipeline_mode<synchronous>, transform_indices = @transform_15, window_bounds = array<i64: 24, 24>}, {transform_indices = @transform_16, window_bounds = array<i64: 1, 1, 128>}]} {
    %c0 = arith.constant 0 : index
    %c0_0 = arith.constant 0 : index
    %c0_1 = arith.constant 0 : index
    %0 = vector.load %arg1[%c0, %c0_0, %c0_1] : memref<1x16x8xf32, #tpu.memory_space<vmem>>, vector<1x16x8xf32>
    %1 = vector.shape_cast %0 : vector<1x16x8xf32> to vector<16x8xf32>
    %c0_2 = arith.constant 0 : index
    %c0_3 = arith.constant 0 : index
    %c0_4 = arith.constant 0 : index
    %2 = vector.load %arg2[%c0_2, %c0_3, %c0_4] : memref<1x48x16xf32, #tpu.memory_space<vmem>>, vector<1x48x16xf32>
    %3 = vector.shape_cast %2 : vector<1x48x16xf32> to vector<48x16xf32>
    %c0_5 = arith.constant 0 : index
    %c0_6 = arith.constant 0 : index
    %c0_7 = arith.constant 0 : index
    %4 = vector.load %arg3[%c0_5, %c0_6, %c0_7] : memref<1x48x48xf32, #tpu.memory_space<vmem>>, vector<1x48x48xf32>
    %5 = vector.shape_cast %4 : vector<1x48x48xf32> to vector<48x48xf32>
    %c0_8 = arith.constant 0 : index
    %c0_9 = arith.constant 0 : index
    %6 = vector.load %arg4[%c0_8, %c0_9] : memref<8x16xf32, #tpu.memory_space<vmem>>, vector<8x16xf32>
    %cst = arith.constant dense<0.000000e+00> : vector<16x16xf32>
    %7 = tpu.matmul %1, %6, %cst {dimension_numbers = #tpu.dot_dimension_numbers<[1], [0], [0], [1], [0, 0, 1, 1], [], []>} : vector<16x8xf32>, vector<8x16xf32>, vector<16x16xf32> -> vector<16x16xf32>
    %cst_10 = arith.constant dense<0.000000e+00> : vector<48x16xf32>
    %8 = tpu.matmul %3, %7, %cst_10 {dimension_numbers = #tpu.dot_dimension_numbers<[1], [0], [0], [1], [0, 0, 1, 1], [], []>} : vector<48x16xf32>, vector<16x16xf32>, vector<48x16xf32> -> vector<48x16xf32>
    %cst_11 = arith.constant 0.000000e+00 : f32
    %9 = vector.broadcast %cst_11 : f32 to vector<48x16xf32>
    %10 = arith.maximumf %8, %9 : vector<48x16xf32>
    %cst_12 = arith.constant dense<0.000000e+00> : vector<48x16xf32>
    %11 = tpu.matmul %5, %10, %cst_12 {dimension_numbers = #tpu.dot_dimension_numbers<[1], [0], [0], [1], [0, 0, 1, 1], [], []>} : vector<48x48xf32>, vector<48x16xf32>, vector<48x16xf32> -> vector<48x16xf32>
    %c0_13 = arith.constant 0 : index
    %c0_14 = arith.constant 0 : index
    %12 = vector.load %arg5[%c0_13, %c0_14] : memref<16x8xf32, #tpu.memory_space<vmem>>, vector<16x8xf32>
    %cst_15 = arith.constant dense<0.000000e+00> : vector<48x8xf32>
    %13 = tpu.matmul %11, %12, %cst_15 {dimension_numbers = #tpu.dot_dimension_numbers<[1], [0], [0], [1], [0, 0, 1, 1], [], []>} : vector<48x16xf32>, vector<16x8xf32>, vector<48x8xf32> -> vector<48x8xf32>
    %cst_16 = arith.constant 0.000000e+00 : f32
    %14 = vector.broadcast %cst_16 : f32 to vector<48x8xf32>
    %15 = arith.maximumf %13, %14 : vector<48x8xf32>
    %c0_17 = arith.constant 0 : index
    %c0_18 = arith.constant 0 : index
    %16 = vector.load %arg6[%c0_17, %c0_18] : memref<16x4xf32, #tpu.memory_space<vmem>>, vector<16x4xf32>
    %cst_19 = arith.constant dense<0.000000e+00> : vector<48x4xf32>
    %17 = tpu.matmul %11, %16, %cst_19 {dimension_numbers = #tpu.dot_dimension_numbers<[1], [0], [0], [1], [0, 0, 1, 1], [], []>} : vector<48x16xf32>, vector<16x4xf32>, vector<48x4xf32> -> vector<48x4xf32>
    %cst_20 = arith.constant dense<0xFF800000> : vector<48xf32>
    %18 = vector.multi_reduction <maximumf>, %17, %cst_20 [1] : vector<48x4xf32> to vector<48xf32>
    %19 = vector.shape_cast %18 : vector<48xf32> to vector<48x1xf32>
    %20 = vector.broadcast %19 : vector<48x1xf32> to vector<48x4xf32>
    %21 = arith.subf %17, %20 : vector<48x4xf32>
    %22 = math.exp %21 : vector<48x4xf32>
    %cst_21 = arith.constant dense<0.000000e+00> : vector<48xf32>
    %23 = vector.multi_reduction <add>, %22, %cst_21 [1] : vector<48x4xf32> to vector<48xf32>
    %24 = vector.shape_cast %23 : vector<48xf32> to vector<48x1xf32>
    %25 = tpu.reciprocal %24 {approx = true} : vector<48x1xf32> -> vector<48x1xf32>
    %26 = vector.broadcast %25 : vector<48x1xf32> to vector<48x4xf32>
    %27 = arith.mulf %22, %26 : vector<48x4xf32>
    %28 = tpu.concatenate %15, %15, %15 in 1 : vector<48x8xf32>, vector<48x8xf32>, vector<48x8xf32> -> vector<48x24xf32>
    %c0_22 = arith.constant 0 : index
    %c0_23 = arith.constant 0 : index
    %29 = vector.load %arg11[%c0_22, %c0_23] : memref<48x24xf32, #tpu.memory_space<vmem>>, vector<48x24xf32>
    %30 = arith.mulf %28, %29 : vector<48x24xf32>
    %cst_24 = arith.constant dense<0.000000e+00> : vector<4x24xf32>
    %31 = tpu.matmul %27, %30, %cst_24 {dimension_numbers = #tpu.dot_dimension_numbers<[0], [0], [1], [1], [0, 1, 1, 1], [], []>} : vector<48x4xf32>, vector<48x24xf32>, vector<4x24xf32> -> vector<4x24xf32>
    %c0_25 = arith.constant 0 : index
    %c0_26 = arith.constant 0 : index
    %32 = vector.load %arg7[%c0_25, %c0_26] : memref<24x64xf32, #tpu.memory_space<vmem>>, vector<24x64xf32>
    %cst_27 = arith.constant dense<0.000000e+00> : vector<4x64xf32>
    %33 = tpu.matmul %31, %32, %cst_27 {dimension_numbers = #tpu.dot_dimension_numbers<[1], [0], [0], [1], [0, 0, 1, 1], [], []>} : vector<4x24xf32>, vector<24x64xf32>, vector<4x64xf32> -> vector<4x64xf32>
    %c0_28 = arith.constant 0 : index
    %c0_29 = arith.constant 0 : index
    %34 = vector.load %arg8[%c0_28, %c0_29] : memref<1x64xf32, #tpu.memory_space<vmem>>, vector<1x64xf32>
    %35 = vector.broadcast %34 : vector<1x64xf32> to vector<4x64xf32>
    %36 = arith.addf %33, %35 : vector<4x64xf32>
    %37 = arith.mulf %36, %36 : vector<4x64xf32>
    %c0_30 = arith.constant 0 : index
    %c0_31 = arith.constant 0 : index
    %38 = vector.load %arg10[%c0_30, %c0_31] : memref<64x64xf32, #tpu.memory_space<vmem>>, vector<64x64xf32>
    %cst_32 = arith.constant dense<0.000000e+00> : vector<4x64xf32>
    %39 = tpu.matmul %37, %38, %cst_32 {dimension_numbers = #tpu.dot_dimension_numbers<[1], [0], [0], [1], [0, 0, 1, 1], [], []>} : vector<4x64xf32>, vector<64x64xf32>, vector<4x64xf32> -> vector<4x64xf32>
    %cst_33 = arith.constant 1.000000e+00 : f32
    %40 = vector.broadcast %cst_33 : f32 to vector<4x64xf32>
    %41 = arith.addf %40, %39 : vector<4x64xf32>
    %42 = tpu.reciprocal %41 {approx = true} : vector<4x64xf32> -> vector<4x64xf32>
    %43 = arith.mulf %39, %42 : vector<4x64xf32>
    %44 = arith.mulf %36, %43 : vector<4x64xf32>
    %cst_34 = arith.constant 9.99999971E-10 : f32
    %45 = vector.broadcast %cst_34 : f32 to vector<4x64xf32>
    %46 = arith.addf %39, %45 : vector<4x64xf32>
    %47 = math.rsqrt %46 : vector<4x64xf32>
    %48 = arith.mulf %44, %47 : vector<4x64xf32>
    %c0_35 = arith.constant 0 : index
    %c0_36 = arith.constant 0 : index
    %49 = vector.load %arg12[%c0_35, %c0_36] : memref<32x4xf32, #tpu.memory_space<vmem>>, vector<32x4xf32>
    %cst_37 = arith.constant dense<0.000000e+00> : vector<32x64xf32>
    %50 = tpu.matmul %49, %48, %cst_37 {dimension_numbers = #tpu.dot_dimension_numbers<[1], [0], [0], [1], [0, 0, 1, 1], [], []>} : vector<32x4xf32>, vector<4x64xf32>, vector<32x64xf32> -> vector<32x64xf32>
    %51 = tpu.concatenate %50, %50, %50, %50 in 1 : vector<32x64xf32>, vector<32x64xf32>, vector<32x64xf32>, vector<32x64xf32> -> vector<32x256xf32>
    %c0_38 = arith.constant 0 : index
    %c0_39 = arith.constant 0 : index
    %52 = vector.load %arg13[%c0_38, %c0_39] : memref<32x256xf32, #tpu.memory_space<vmem>>, vector<32x256xf32>
    %53 = arith.mulf %51, %52 : vector<32x256xf32>
    %c0_40 = arith.constant 0 : index
    %c0_41 = arith.constant 0 : index
    %54 = vector.load %arg9[%c0_40, %c0_41] : memref<256x24xf32, #tpu.memory_space<vmem>>, vector<256x24xf32>
    %cst_42 = arith.constant dense<0.000000e+00> : vector<32x24xf32>
    %55 = tpu.matmul %53, %54, %cst_42 {dimension_numbers = #tpu.dot_dimension_numbers<[1], [0], [0], [1], [0, 0, 1, 1], [], []>} : vector<32x256xf32>, vector<256x24xf32>, vector<32x24xf32> -> vector<32x24xf32>
    %c0_43 = arith.constant 0 : index
    %c0_44 = arith.constant 0 : index
    %56 = vector.load %arg14[%c0_43, %c0_44] : memref<3x24xf32, #tpu.memory_space<vmem>>, vector<3x24xf32>
    %c0_45 = arith.constant 0 : index
    %c0_46 = arith.constant 0 : index
    %57 = vector.load %arg15[%c0_45, %c0_46] : memref<24x3xf32, #tpu.memory_space<vmem>>, vector<24x3xf32>
    %c0_47 = arith.constant 0 : index
    %c0_48 = arith.constant 0 : index
    %58 = vector.load %arg16[%c0_47, %c0_48] : memref<24x24xf32, #tpu.memory_space<vmem>>, vector<24x24xf32>
    %cst_49 = arith.constant dense<0.000000e+00> : vector<24xf32>
    %59 = vector.multi_reduction <add>, %55, %cst_49 [0] : vector<32x24xf32> to vector<24xf32>
    %60 = vector.shape_cast %59 : vector<24xf32> to vector<1x24xf32>
    %cst_50 = arith.constant 0.333333343 : f32
    %61 = vector.broadcast %cst_50 : f32 to vector<1x24xf32>
    %62 = arith.mulf %60, %61 : vector<1x24xf32>
    %63 = arith.mulf %62, %62 : vector<1x24xf32>
    %cst_51 = arith.constant dense<0.000000e+00> : vector<1x24xf32>
    %64 = tpu.matmul %63, %58, %cst_51 {dimension_numbers = #tpu.dot_dimension_numbers<[1], [0], [0], [1], [0, 0, 1, 1], [], []>} : vector<1x24xf32>, vector<24x24xf32>, vector<1x24xf32> -> vector<1x24xf32>
    %cst_52 = arith.constant 1.000000e+00 : f32
    %65 = vector.broadcast %cst_52 : f32 to vector<1x24xf32>
    %66 = arith.addf %65, %64 : vector<1x24xf32>
    %67 = tpu.reciprocal %66 {approx = true} : vector<1x24xf32> -> vector<1x24xf32>
    %68 = arith.mulf %64, %67 : vector<1x24xf32>
    %69 = arith.mulf %62, %68 : vector<1x24xf32>
    %cst_53 = arith.constant 9.99999971E-10 : f32
    %70 = vector.broadcast %cst_53 : f32 to vector<1x24xf32>
    %71 = arith.addf %64, %70 : vector<1x24xf32>
    %72 = math.rsqrt %71 : vector<1x24xf32>
    %73 = arith.mulf %69, %72 : vector<1x24xf32>
    %74 = vector.broadcast %73 : vector<1x24xf32> to vector<32x24xf32>
    %75 = arith.mulf %55, %74 : vector<32x24xf32>
    %cst_54 = arith.constant dense<0.000000e+00> : vector<32x3xf32>
    %76 = tpu.matmul %75, %57, %cst_54 {dimension_numbers = #tpu.dot_dimension_numbers<[1], [0], [0], [1], [0, 0, 1, 1], [], []>} : vector<32x24xf32>, vector<24x3xf32>, vector<32x3xf32> -> vector<32x3xf32>
    %cst_55 = arith.constant dense<0xFF800000> : vector<32xf32>
    %77 = vector.multi_reduction <maximumf>, %76, %cst_55 [1] : vector<32x3xf32> to vector<32xf32>
    %78 = vector.shape_cast %77 : vector<32xf32> to vector<32x1xf32>
    %79 = vector.broadcast %78 : vector<32x1xf32> to vector<32x3xf32>
    %80 = arith.subf %76, %79 : vector<32x3xf32>
    %81 = math.exp %80 : vector<32x3xf32>
    %cst_56 = arith.constant dense<0.000000e+00> : vector<32xf32>
    %82 = vector.multi_reduction <add>, %81, %cst_56 [1] : vector<32x3xf32> to vector<32xf32>
    %83 = vector.shape_cast %82 : vector<32xf32> to vector<32x1xf32>
    %84 = tpu.reciprocal %83 {approx = true} : vector<32x1xf32> -> vector<32x1xf32>
    %85 = vector.broadcast %84 : vector<32x1xf32> to vector<32x3xf32>
    %86 = arith.mulf %81, %85 : vector<32x3xf32>
    %cst_57 = arith.constant dense<0.000000e+00> : vector<32x24xf32>
    %87 = tpu.matmul %86, %56, %cst_57 {dimension_numbers = #tpu.dot_dimension_numbers<[1], [0], [0], [1], [0, 0, 1, 1], [], []>} : vector<32x3xf32>, vector<3x24xf32>, vector<32x24xf32> -> vector<32x24xf32>
    %88 = arith.mulf %87, %55 : vector<32x24xf32>
    %cst_58 = arith.constant dense<0.000000e+00> : vector<24xf32>
    %89 = vector.multi_reduction <add>, %88, %cst_58 [0] : vector<32x24xf32> to vector<24xf32>
    %90 = vector.shape_cast %89 : vector<24xf32> to vector<1x24xf32>
    %91 = arith.mulf %90, %90 : vector<1x24xf32>
    %cst_59 = arith.constant dense<0.000000e+00> : vector<1x24xf32>
    %92 = tpu.matmul %91, %58, %cst_59 {dimension_numbers = #tpu.dot_dimension_numbers<[1], [0], [0], [1], [0, 0, 1, 1], [], []>} : vector<1x24xf32>, vector<24x24xf32>, vector<1x24xf32> -> vector<1x24xf32>
    %cst_60 = arith.constant 1.000000e+00 : f32
    %93 = vector.broadcast %cst_60 : f32 to vector<1x24xf32>
    %94 = arith.addf %93, %92 : vector<1x24xf32>
    %95 = tpu.reciprocal %94 {approx = true} : vector<1x24xf32> -> vector<1x24xf32>
    %96 = arith.mulf %92, %95 : vector<1x24xf32>
    %97 = arith.mulf %90, %96 : vector<1x24xf32>
    %cst_61 = arith.constant 9.99999971E-10 : f32
    %98 = vector.broadcast %cst_61 : f32 to vector<1x24xf32>
    %99 = arith.addf %92, %98 : vector<1x24xf32>
    %100 = math.rsqrt %99 : vector<1x24xf32>
    %101 = arith.mulf %97, %100 : vector<1x24xf32>
    %102 = vector.broadcast %101 : vector<1x24xf32> to vector<32x24xf32>
    %103 = arith.mulf %55, %102 : vector<32x24xf32>
    %cst_62 = arith.constant dense<0.000000e+00> : vector<32x3xf32>
    %104 = tpu.matmul %103, %57, %cst_62 {dimension_numbers = #tpu.dot_dimension_numbers<[1], [0], [0], [1], [0, 0, 1, 1], [], []>} : vector<32x24xf32>, vector<24x3xf32>, vector<32x3xf32> -> vector<32x3xf32>
    %105 = arith.addf %76, %104 : vector<32x3xf32>
    %cst_63 = arith.constant dense<0xFF800000> : vector<32xf32>
    %106 = vector.multi_reduction <maximumf>, %105, %cst_63 [1] : vector<32x3xf32> to vector<32xf32>
    %107 = vector.shape_cast %106 : vector<32xf32> to vector<32x1xf32>
    %108 = vector.broadcast %107 : vector<32x1xf32> to vector<32x3xf32>
    %109 = arith.subf %105, %108 : vector<32x3xf32>
    %110 = math.exp %109 : vector<32x3xf32>
    %cst_64 = arith.constant dense<0.000000e+00> : vector<32xf32>
    %111 = vector.multi_reduction <add>, %110, %cst_64 [1] : vector<32x3xf32> to vector<32xf32>
    %112 = vector.shape_cast %111 : vector<32xf32> to vector<32x1xf32>
    %113 = tpu.reciprocal %112 {approx = true} : vector<32x1xf32> -> vector<32x1xf32>
    %114 = vector.broadcast %113 : vector<32x1xf32> to vector<32x3xf32>
    %115 = arith.mulf %110, %114 : vector<32x3xf32>
    %cst_65 = arith.constant dense<0.000000e+00> : vector<32x24xf32>
    %116 = tpu.matmul %115, %56, %cst_65 {dimension_numbers = #tpu.dot_dimension_numbers<[1], [0], [0], [1], [0, 0, 1, 1], [], []>} : vector<32x3xf32>, vector<3x24xf32>, vector<32x24xf32> -> vector<32x24xf32>
    %117 = arith.mulf %116, %55 : vector<32x24xf32>
    %cst_66 = arith.constant dense<0.000000e+00> : vector<24xf32>
    %118 = vector.multi_reduction <add>, %117, %cst_66 [0] : vector<32x24xf32> to vector<24xf32>
    %119 = vector.shape_cast %118 : vector<24xf32> to vector<1x24xf32>
    %120 = arith.mulf %119, %119 : vector<1x24xf32>
    %cst_67 = arith.constant dense<0.000000e+00> : vector<1x24xf32>
    %121 = tpu.matmul %120, %58, %cst_67 {dimension_numbers = #tpu.dot_dimension_numbers<[1], [0], [0], [1], [0, 0, 1, 1], [], []>} : vector<1x24xf32>, vector<24x24xf32>, vector<1x24xf32> -> vector<1x24xf32>
    %cst_68 = arith.constant 1.000000e+00 : f32
    %122 = vector.broadcast %cst_68 : f32 to vector<1x24xf32>
    %123 = arith.addf %122, %121 : vector<1x24xf32>
    %124 = tpu.reciprocal %123 {approx = true} : vector<1x24xf32> -> vector<1x24xf32>
    %125 = arith.mulf %121, %124 : vector<1x24xf32>
    %126 = arith.mulf %119, %125 : vector<1x24xf32>
    %cst_69 = arith.constant 9.99999971E-10 : f32
    %127 = vector.broadcast %cst_69 : f32 to vector<1x24xf32>
    %128 = arith.addf %121, %127 : vector<1x24xf32>
    %129 = math.rsqrt %128 : vector<1x24xf32>
    %130 = arith.mulf %126, %129 : vector<1x24xf32>
    %cst_70 = arith.constant 0.000000e+00 : f32
    %131 = vector.broadcast %cst_70 : f32 to vector<1x104xf32>
    %132 = tpu.concatenate %130, %131 in 1 : vector<1x24xf32>, vector<1x104xf32> -> vector<1x128xf32>
    %c0_71 = arith.constant 0 : index
    %c0_72 = arith.constant 0 : index
    %c0_73 = arith.constant 0 : index
    %133 = vector.load %arg17[%c0_71, %c0_72, %c0_73] : memref<1x1x128xf32, #tpu.memory_space<vmem>>, vector<1x1x128xf32>
    %134 = vector.shape_cast %133 : vector<1x1x128xf32> to vector<1x128xf32>
    %135 = vector.shape_cast %132 : vector<1x128xf32> to vector<1x1x128xf32>
    tpu.vector_store %arg17[%c0_71, %c0_72, %c0_73], %135 {strides = array<i32>} : memref<1x1x128xf32, #tpu.memory_space<vmem>>, vector<1x1x128xf32>,
    return
  }
  func.func @transform_0(%arg0: i32) -> (i32, i32, i32) {
    %c0_i32 = arith.constant 0 : i32
    %c0_i32_0 = arith.constant 0 : i32
    %c0_i32_1 = arith.constant 0 : i32
    return %arg0, %c0_i32, %c0_i32_0 : i32, i32, i32
  }
  func.func @transform_1(%arg0: i32) -> (i32, i32, i32) {
    %c0_i32 = arith.constant 0 : i32
    %c0_i32_0 = arith.constant 0 : i32
    %c0_i32_1 = arith.constant 0 : i32
    return %arg0, %c0_i32, %c0_i32_0 : i32, i32, i32
  }
  func.func @transform_2(%arg0: i32) -> (i32, i32, i32) {
    %c0_i32 = arith.constant 0 : i32
    %c0_i32_0 = arith.constant 0 : i32
    %c0_i32_1 = arith.constant 0 : i32
    return %arg0, %c0_i32, %c0_i32_0 : i32, i32, i32
  }
  func.func @transform_3(%arg0: i32) -> (i32, i32) {
    %c0_i32 = arith.constant 0 : i32
    %c0_i32_0 = arith.constant 0 : i32
    %c0_i32_1 = arith.constant 0 : i32
    return %c0_i32, %c0_i32_0 : i32, i32
  }
  func.func @transform_4(%arg0: i32) -> (i32, i32) {
    %c0_i32 = arith.constant 0 : i32
    %c0_i32_0 = arith.constant 0 : i32
    %c0_i32_1 = arith.constant 0 : i32
    return %c0_i32, %c0_i32_0 : i32, i32
  }
  func.func @transform_5(%arg0: i32) -> (i32, i32) {
    %c0_i32 = arith.constant 0 : i32
    %c0_i32_0 = arith.constant 0 : i32
    %c0_i32_1 = arith.constant 0 : i32
    return %c0_i32, %c0_i32_0 : i32, i32
  }
  func.func @transform_6(%arg0: i32) -> (i32, i32) {
    %c0_i32 = arith.constant 0 : i32
    %c0_i32_0 = arith.constant 0 : i32
    %c0_i32_1 = arith.constant 0 : i32
    return %c0_i32, %c0_i32_0 : i32, i32
  }
  func.func @transform_7(%arg0: i32) -> (i32, i32) {
    %c0_i32 = arith.constant 0 : i32
    %c0_i32_0 = arith.constant 0 : i32
    %c0_i32_1 = arith.constant 0 : i32
    return %c0_i32, %c0_i32_0 : i32, i32
  }
  func.func @transform_8(%arg0: i32) -> (i32, i32) {
    %c0_i32 = arith.constant 0 : i32
    %c0_i32_0 = arith.constant 0 : i32
    %c0_i32_1 = arith.constant 0 : i32
    return %c0_i32, %c0_i32_0 : i32, i32
  }
  func.func @transform_9(%arg0: i32) -> (i32, i32) {
    %c0_i32 = arith.constant 0 : i32
    %c0_i32_0 = arith.constant 0 : i32
    %c0_i32_1 = arith.constant 0 : i32
    return %c0_i32, %c0_i32_0 : i32, i32
  }
  func.func @transform_10(%arg0: i32) -> (i32, i32) {
    %c0_i32 = arith.constant 0 : i32
    %c0_i32_0 = arith.constant 0 : i32
    %c0_i32_1 = arith.constant 0 : i32
    return %c0_i32, %c0_i32_0 : i32, i32
  }
  func.func @transform_11(%arg0: i32) -> (i32, i32) {
    %c0_i32 = arith.constant 0 : i32
    %c0_i32_0 = arith.constant 0 : i32
    %c0_i32_1 = arith.constant 0 : i32
    return %c0_i32, %c0_i32_0 : i32, i32
  }
  func.func @transform_12(%arg0: i32) -> (i32, i32) {
    %c0_i32 = arith.constant 0 : i32
    %c0_i32_0 = arith.constant 0 : i32
    %c0_i32_1 = arith.constant 0 : i32
    return %c0_i32, %c0_i32_0 : i32, i32
  }
  func.func @transform_13(%arg0: i32) -> (i32, i32) {
    %c0_i32 = arith.constant 0 : i32
    %c0_i32_0 = arith.constant 0 : i32
    %c0_i32_1 = arith.constant 0 : i32
    return %c0_i32, %c0_i32_0 : i32, i32
  }
  func.func @transform_14(%arg0: i32) -> (i32, i32) {
    %c0_i32 = arith.constant 0 : i32
    %c0_i32_0 = arith.constant 0 : i32
    %c0_i32_1 = arith.constant 0 : i32
    return %c0_i32, %c0_i32_0 : i32, i32
  }
  func.func @transform_15(%arg0: i32) -> (i32, i32) {
    %c0_i32 = arith.constant 0 : i32
    %c0_i32_0 = arith.constant 0 : i32
    %c0_i32_1 = arith.constant 0 : i32
    return %c0_i32, %c0_i32_0 : i32, i32
  }
  func.func @transform_16(%arg0: i32) -> (i32, i32, i32) {
    %c0_i32 = arith.constant 0 : i32
    %c0_i32_0 = arith.constant 0 : i32
    %c0_i32_1 = arith.constant 0 : i32
    return %arg0, %c0_i32, %c0_i32_0 : i32, i32, i32
  }
}

</mosaic_0001>

<llo_original>
// kernel: squeeze.1
$region0: #{squeeze.1}
  %s0 = inlined_call_operand.vmem [shape: f32[8,24], index: 0, kind: input, shape index: {}]
  %s1 = inlined_call_operand.vmem [shape: f32[8,3,8], index: 1, kind: output, shape index: {}]
  $region1: #{squeeze.1} parent=0
    #allocation0 [shape = 'u8[32768]{0}', space=vmem, size = 0x8000, scoped, tag = 'scoped mem for output reshape']
    %v2 = vld [vmem:[%s0] sm:$0xff]
    %vm3 = vcmask 64512
    %4 = vst.msk [vmem:[#allocation0] ss:$8 sm:$0xf] %vm3, %v2
    %5 = vst.msk [vmem:[#allocation0] ss:$8 sm:$0xf0] %vm3, %v2
    %v6 = vld [vmem:[%s0] sm:$0xff]
    %7 = vrot.lane.b32.xlu0 %v6, 120
    %v8 = vpop.permute.xlu0 %7
    %vm9 = vcmask 64512
    %s10 = scalar_lea.vmem [#allocation0], 1
    %11 = vst.msk [vmem:[%s10] ss:$8 sm:$0xf] %vm9, %v8
    %s12 = scalar_lea.vmem [#allocation0], 1
    %13 = vst.msk [vmem:[%s12] ss:$8 sm:$0xf0] %vm9, %v8
    %v14 = vld [vmem:[%s0] sm:$0xff]
    %15 = vrot.lane.b32.xlu0 %v14, 112
    %v16 = vpop.permute.xlu0 %15
    %vm17 = vcmask 64512
    %s18 = scalar_lea.vmem [#allocation0], 2
    %19 = vst.msk [vmem:[%s18] ss:$8 sm:$0xf] %vm17, %v16
    %s20 = scalar_lea.vmem [#allocation0], 2
    %21 = vst.msk [vmem:[%s20] ss:$8 sm:$0xf0] %vm17, %v16
    %s23 = sshllo.u32 0, 4
    %v25 = vld [vmem:[#allocation0] sm:%s23]
    %s26 = sshllo.u32 0, 4
    %27 = vst [vmem:[%s1] sm:%s26] %v25
    %s28 = scalar_lea.vmem [#allocation0], 8
    %v29 = vld [vmem:[%s28] sm:%s23]
    %s30 = sshllo.u32 0, 4
    %s31 = scalar_lea.vmem %s1, 4
    %32 = vst [vmem:[%s31] sm:%s30] %v29
    %s33 = scalar_lea.vmem [#allocation0], 16
    %v34 = vld [vmem:[%s33] sm:%s23]
    %s35 = sshllo.u32 0, 4
    %s36 = smul.addr 4, 2
    %s37 = scalar_lea.vmem %s1, %s36
    %38 = vst [vmem:[%s37] sm:%s35] %v34
    %s39 = scalar_lea.vmem [#allocation0], 24
    %v40 = vld [vmem:[%s39] sm:%s23]
    %s41 = sshllo.u32 0, 4
    %s42 = smul.addr 4, 3
    %s43 = scalar_lea.vmem %s1, %s42
    %44 = vst [vmem:[%s43] sm:%s41] %v40
    %s45 = scalar_lea.vmem [#allocation0], 32
    %v46 = vld [vmem:[%s45] sm:%s23]
    %s47 = sshllo.u32 0, 4
    %s48 = smul.addr 4, 4
    %s49 = scalar_lea.vmem %s1, %s48
    %50 = vst [vmem:[%s49] sm:%s47] %v46
    %s51 = scalar_lea.vmem [#allocation0], 40
    %v52 = vld [vmem:[%s51] sm:%s23]
    %s53 = sshllo.u32 0, 4
    %s54 = smul.addr 4, 5
    %s55 = scalar_lea.vmem %s1, %s54
    %56 = vst [vmem:[%s55] sm:%s53] %v52
    %s57 = scalar_lea.vmem [#allocation0], 48
    %v58 = vld [vmem:[%s57] sm:%s23]
    %s59 = sshllo.u32 0, 4
    %s60 = smul.addr 4, 6
    %s61 = scalar_lea.vmem %s1, %s60
    %62 = vst [vmem:[%s61] sm:%s59] %v58
    %s63 = scalar_lea.vmem [#allocation0], 56
    %v64 = vld [vmem:[%s63] sm:%s23]
    %s65 = sshllo.u32 0, 4
    %s66 = smul.addr 4, 7
    %s67 = scalar_lea.vmem %s1, %s66
    %68 = vst [vmem:[%s67] sm:%s65] %v64

// kernel: motif_aware_capnn_forward_batched.1
$region0: #{motif_aware_capnn_forward_batched.1}
  #allocation0 [shape = 'u32[]', space=smem, size = 0x4, offset = 0x4, fixed_abs, tag = 'smem constant byte address 0x4 - core index']
  #allocation1 [shape = 'u32[144,128]{1,0:T(1,128)}', space=vmem, size = 0x12000, scoped, tag = 'internal scratch']
  %s0 = inlined_call_operand.vmem [shape: f32[8,16,8], index: 0, kind: input, shape index: {}]
  %s1 = inlined_call_operand.vmem [shape: f32[8,48,16], index: 1, kind: input, shape index: {}]
  %s2 = inlined_call_operand.vmem [shape: f32[8,48,48], index: 2, kind: input, shape index: {}]
  %s3 = inlined_call_operand.vmem [shape: f32[8,16], index: 3, kind: input, shape index: {}]
  %s4 = inlined_call_operand.vmem [shape: f32[16,8], index: 4, kind: input, shape index: {}]
  %s5 = inlined_call_operand.vmem [shape: f32[16,4], index: 5, kind: input, shape index: {}]
  %s6 = inlined_call_operand.vmem [shape: f32[24,64], index: 6, kind: input, shape index: {}]
  %s7 = inlined_call_operand.vmem [shape: f32[1,64], index: 7, kind: input, shape index: {}]
  %s8 = inlined_call_operand.vmem [shape: f32[256,24], index: 8, kind: input, shape index: {}]
  %s9 = inlined_call_operand.vmem [shape: f32[64,64], index: 9, kind: input, shape index: {}]
  %s10 = inlined_call_operand.vmem [shape: f32[48,24], index: 10, kind: input, shape index: {}]
  %s11 = inlined_call_operand.vmem [shape: f32[32,4], index: 11, kind: input, shape index: {}]
  %s12 = inlined_call_operand.vmem [shape: f32[32,256], index: 12, kind: input, shape index: {}]
  %s13 = inlined_call_operand.vmem [shape: f32[3,24], index: 13, kind: input, shape index: {}]
  %s14 = inlined_call_operand.vmem [shape: f32[24,3], index: 14, kind: input, shape index: {}]
  %s15 = inlined_call_operand.vmem [shape: f32[24,24], index: 15, kind: input, shape index: {}]
  %s16 = inlined_call_operand.vmem [shape: f32[8,1,128], index: 16, kind: output, shape index: {}]
  %s17 = sld [smem:[#allocation0]]
  $region97: #{motif_aware_capnn_forward_batched.1} parent=0
    _
  %s19 = ssub.s32 1, %s17
  %s20 = scalar_select 0, %s19, %s17
  loop: start=0, step=1, limit=10
  $region2: #{motif_aware_capnn_forward_batched.1} parent=0 // loop_pre_header
    _
  $region3: #{motif_aware_capnn_forward_batched.1} parent=0 // loop_header
    %s22 = sphi 0, %s26
    %p23 = scmp.ge.s32.totalorder %s22, 10
    %s32 = sphi 0, %s34
    %s35 = sphi 0, %s32
    %s36 = sphi 0, %s35
    %s52 = sphi 0, %s36
    %s58 = sphi 0, %s60
    %s61 = sphi 0, %s58
    %s62 = sphi 0, %s61
    %s78 = sphi 0, %s62
    %s84 = sphi 0, %s86
    %s87 = sphi 0, %s84
    %s88 = sphi 0, %s87
    %s104 = sphi 0, %s88
    %s108 = sphi 0, %s108
    %s110 = sphi 0, %s108
    %s111 = sphi 0, %s110
    %s125 = sphi 0, %s111
    %s129 = sphi 0, %s129
    %s131 = sphi 0, %s129
    %s132 = sphi 0, %s131
    %s146 = sphi 0, %s132
    %s150 = sphi 0, %s150
    %s152 = sphi 0, %s150
    %s153 = sphi 0, %s152
    %s167 = sphi 0, %s153
    %s171 = sphi 0, %s171
    %s173 = sphi 0, %s171
    %s174 = sphi 0, %s173
    %s188 = sphi 0, %s174
    %s192 = sphi 0, %s192
    %s194 = sphi 0, %s192
    %s195 = sphi 0, %s194
    %s209 = sphi 0, %s195
    %s213 = sphi 0, %s213
    %s215 = sphi 0, %s213
    %s216 = sphi 0, %s215
    %s230 = sphi 0, %s216
    %s234 = sphi 0, %s234
    %s236 = sphi 0, %s234
    %s237 = sphi 0, %s236
    %s251 = sphi 0, %s237
    %s255 = sphi 0, %s255
    %s257 = sphi 0, %s255
    %s258 = sphi 0, %s257
    %s272 = sphi 0, %s258
    %s276 = sphi 0, %s276
    %s278 = sphi 0, %s276
    %s279 = sphi 0, %s278
    %s293 = sphi 0, %s279
    %s297 = sphi 0, %s297
    %s299 = sphi 0, %s297
    %s300 = sphi 0, %s299
    %s314 = sphi 0, %s300
    %s318 = sphi 0, %s318
    %s320 = sphi 0, %s318
    %s321 = sphi 0, %s320
    %s335 = sphi 0, %s321
    %s339 = sphi 0, %s339
    %s341 = sphi 0, %s339
    %s342 = sphi 0, %s341
    %s356 = sphi 0, %s342
    %s360 = sphi 0, %s360
    %s362 = sphi 0, %s360
    %s363 = sphi 0, %s362
    %s377 = sphi 0, %s363
    %s383 = sphi 0, %s385
    %s386 = sphi 0, %s383
    %s387 = sphi 0, %s386
    %s403 = sphi 0, %s387
  $region4: #{motif_aware_capnn_forward_batched.1} parent=0 // loop_header_branch
    %25 = sbr.rel (%p23) target = $region8
  $region5: #{motif_aware_capnn_forward_batched.1} parent=0 // loop_body
    %s27 = ssub.s32 %s22, 1
    %s28 = ssub.s32 %s22, 2
    %s29 = sadd.s32 %s22, 1
    %s30 = ssub.s32 %s22, %s29
    %p31 = scmp.eq.s32.totalorder %s30, 0
    %s33 = sadd.s32 %s32, 1
    %s34 = scalar_select %p31, %s32, %s33
    %p37 = pneg %p31
    %p38 = scmp.eq.s32.totalorder %s22, 7
    %p39 = por %p37, %p38
    %p40 = scmp.ne.s32.totalorder %s32, %s35
    %p41 = scmp.eq.s32.totalorder %s22, 0
    %p42 = por %p40, %p41
    %p43 = scmp.ne.s32.totalorder %s32, %s35
    %p44 = scmp.eq.s32.totalorder %s27, 7
    %p45 = por %p43, %p44
    %p46 = scmp.ne.s32.totalorder %s35, %s36
    %p47 = scmp.eq.s32.totalorder %s27, 0
    %p48 = por %p46, %p47
    %p49 = scmp.ne.s32.totalorder %s35, %s36
    %p50 = scmp.eq.s32.totalorder %s28, 7
    %p51 = por %p49, %p50
    %p53 = scmp.ne.s32.totalorder %s36, %s52
    %p54 = scmp.eq.s32.totalorder %s28, 0
    %p55 = por %p53, %p54
    %s56 = ssub.s32 %s22, %s29
    %p57 = scmp.eq.s32.totalorder %s56, 0
    %s59 = sadd.s32 %s58, 1
    %s60 = scalar_select %p57, %s58, %s59
    %p63 = pneg %p57
    %p64 = scmp.eq.s32.totalorder %s22, 7
    %p65 = por %p63, %p64
    %p66 = scmp.ne.s32.totalorder %s58, %s61
    %p67 = scmp.eq.s32.totalorder %s22, 0
    %p68 = por %p66, %p67
    %p69 = scmp.ne.s32.totalorder %s58, %s61
    %p70 = scmp.eq.s32.totalorder %s27, 7
    %p71 = por %p69, %p70
    %p72 = scmp.ne.s32.totalorder %s61, %s62
    %p73 = scmp.eq.s32.totalorder %s27, 0
    %p74 = por %p72, %p73
    %p75 = scmp.ne.s32.totalorder %s61, %s62
    %p76 = scmp.eq.s32.totalorder %s28, 7
    %p77 = por %p75, %p76
    %p79 = scmp.ne.s32.totalorder %s62, %s78
    %p80 = scmp.eq.s32.totalorder %s28, 0
    %p81 = por %p79, %p80
    %s82 = ssub.s32 %s22, %s29
    %p83 = scmp.eq.s32.totalorder %s82, 0
    %s85 = sadd.s32 %s84, 1
    %s86 = scalar_select %p83, %s84, %s85
    %p89 = pneg %p83
    %p90 = scmp.eq.s32.totalorder %s22, 7
    %p91 = por %p89, %p90
    %p92 = scmp.ne.s32.totalorder %s84, %s87
    %p93 = scmp.eq.s32.totalorder %s22, 0
    %p94 = por %p92, %p93
    %p95 = scmp.ne.s32.totalorder %s84, %s87
    %p96 = scmp.eq.s32.totalorder %s27, 7
    %p97 = por %p95, %p96
    %p98 = scmp.ne.s32.totalorder %s87, %s88
    %p99 = scmp.eq.s32.totalorder %s27, 0
    %p100 = por %p98, %p99
    %p101 = scmp.ne.s32.totalorder %s87, %s88
    %p102 = scmp.eq.s32.totalorder %s28, 7
    %p103 = por %p101, %p102
    %p105 = scmp.ne.s32.totalorder %s88, %s104
    %p106 = scmp.eq.s32.totalorder %s28, 0
    %p107 = por %p105, %p106
    %s109 = sadd.s32 %s108, 1
    %p112 = scmp.eq.s32.totalorder %s22, 7
    %p113 = scmp.ne.s32.totalorder %s108, %s110
    %p114 = scmp.eq.s32.totalorder %s22, 0
    %p115 = por %p113, %p114
    %p116 = scmp.ne.s32.totalorder %s108, %s110
    %p117 = scmp.eq.s32.totalorder %s27, 7
    %p118 = por %p116, %p117
    %p119 = scmp.ne.s32.totalorder %s110, %s111
    %p120 = scmp.eq.s32.totalorder %s27, 0
    %p121 = por %p119, %p120
    %p122 = scmp.ne.s32.totalorder %s110, %s111
    %p123 = scmp.eq.s32.totalorder %s28, 7
    %p124 = por %p122, %p123
    %p126 = scmp.ne.s32.totalorder %s111, %s125
    %p127 = scmp.eq.s32.totalorder %s28, 0
    %p128 = por %p126, %p127
    %s130 = sadd.s32 %s129, 1
    %p133 = scmp.eq.s32.totalorder %s22, 7
    %p134 = scmp.ne.s32.totalorder %s129, %s131
    %p135 = scmp.eq.s32.totalorder %s22, 0
    %p136 = por %p134, %p135
    %p137 = scmp.ne.s32.totalorder %s129, %s131
    %p138 = scmp.eq.s32.totalorder %s27, 7
    %p139 = por %p137, %p138
    %p140 = scmp.ne.s32.totalorder %s131, %s132
    %p141 = scmp.eq.s32.totalorder %s27, 0
    %p142 = por %p140, %p141
    %p143 = scmp.ne.s32.totalorder %s131, %s132
    %p144 = scmp.eq.s32.totalorder %s28, 7
    %p145 = por %p143, %p144
    %p147 = scmp.ne.s32.totalorder %s132, %s146
    %p148 = scmp.eq.s32.totalorder %s28, 0
    %p149 = por %p147, %p148
    %s151 = sadd.s32 %s150, 1
    %p154 = scmp.eq.s32.totalorder %s22, 7
    %p155 = scmp.ne.s32.totalorder %s150, %s152
    %p156 = scmp.eq.s32.totalorder %s22, 0
    %p157 = por %p155, %p156
    %p158 = scmp.ne.s32.totalorder %s150, %s152
    %p159 = scmp.eq.s32.totalorder %s27, 7
    %p160 = por %p158, %p159
    %p161 = scmp.ne.s32.totalorder %s152, %s153
    %p162 = scmp.eq.s32.totalorder %s27, 0
    %p163 = por %p161, %p162
    %p164 = scmp.ne.s32.totalorder %s152, %s153
    %p165 = scmp.eq.s32.totalorder %s28, 7
    %p166 = por %p164, %p165
    %p168 = scmp.ne.s32.totalorder %s153, %s167
    %p169 = scmp.eq.s32.totalorder %s28, 0
    %p170 = por %p168, %p169
    %s172 = sadd.s32 %s171, 1
    %p175 = scmp.eq.s32.totalorder %s22, 7
    %p176 = scmp.ne.s32.totalorder %s171, %s173
    %p177 = scmp.eq.s32.totalorder %s22, 0
    %p178 = por %p176, %p177
    %p179 = scmp.ne.s32.totalorder %s171, %s173
    %p180 = scmp.eq.s32.totalorder %s27, 7
    %p181 = por %p179, %p180
    %p182 = scmp.ne.s32.totalorder %s173, %s174
    %p183 = scmp.eq.s32.totalorder %s27, 0
    %p184 = por %p182, %p183
    %p185 = scmp.ne.s32.totalorder %s173, %s174
    %p186 = scmp.eq.s32.totalorder %s28, 7
    %p187 = por %p185, %p186
    %p189 = scmp.ne.s32.totalorder %s174, %s188
    %p190 = scmp.eq.s32.totalorder %s28, 0
    %p191 = por %p189, %p190
    %s193 = sadd.s32 %s192, 1
    %p196 = scmp.eq.s32.totalorder %s22, 7
    %p197 = scmp.ne.s32.totalorder %s192, %s194
    %p198 = scmp.eq.s32.totalorder %s22, 0
    %p199 = por %p197, %p198
    %p200 = scmp.ne.s32.totalorder %s192, %s194
    %p201 = scmp.eq.s32.totalorder %s27, 7
    %p202 = por %p200, %p201
    %p203 = scmp.ne.s32.totalorder %s194, %s195
    %p204 = scmp.eq.s32.totalorder %s27, 0
    %p205 = por %p203, %p204
    %p206 = scmp.ne.s32.totalorder %s194, %s195
    %p207 = scmp.eq.s32.totalorder %s28, 7
    %p208 = por %p206, %p207
    %p210 = scmp.ne.s32.totalorder %s195, %s209
    %p211 = scmp.eq.s32.totalorder %s28, 0
    %p212 = por %p210, %p211
    %s214 = sadd.s32 %s213, 1
    %p217 = scmp.eq.s32.totalorder %s22, 7
    %p218 = scmp.ne.s32.totalorder %s213, %s215
    %p219 = scmp.eq.s32.totalorder %s22, 0
    %p220 = por %p218, %p219
    %p221 = scmp.ne.s32.totalorder %s213, %s215
    %p222 = scmp.eq.s32.totalorder %s27, 7
    %p223 = por %p221, %p222
    %p224 = scmp.ne.s32.totalorder %s215, %s216
    %p225 = scmp.eq.s32.totalorder %s27, 0
    %p226 = por %p224, %p225
    %p227 = scmp.ne.s32.totalorder %s215, %s216
    %p228 = scmp.eq.s32.totalorder %s28, 7
    %p229 = por %p227, %p228
    %p231 = scmp.ne.s32.totalorder %s216, %s230
    %p232 = scmp.eq.s32.totalorder %s28, 0
    %p233 = por %p231, %p232
    %s235 = sadd.s32 %s234, 1
    %p238 = scmp.eq.s32.totalorder %s22, 7
    %p239 = scmp.ne.s32.totalorder %s234, %s236
    %p240 = scmp.eq.s32.totalorder %s22, 0
    %p241 = por %p239, %p240
    %p242 = scmp.ne.s32.totalorder %s234, %s236
    %p243 = scmp.eq.s32.totalorder %s27, 7
    %p244 = por %p242, %p243
    %p245 = scmp.ne.s32.totalorder %s236, %s237
    %p246 = scmp.eq.s32.totalorder %s27, 0
    %p247 = por %p245, %p246
    %p248 = scmp.ne.s32.totalorder %s236, %s237
    %p249 = scmp.eq.s32.totalorder %s28, 7
    %p250 = por %p248, %p249
    %p252 = scmp.ne.s32.totalorder %s237, %s251
    %p253 = scmp.eq.s32.totalorder %s28, 0
    %p254 = por %p252, %p253
    %s256 = sadd.s32 %s255, 1
    %p259 = scmp.eq.s32.totalorder %s22, 7
    %p260 = scmp.ne.s32.totalorder %s255, %s257
    %p261 = scmp.eq.s32.totalorder %s22, 0
    %p262 = por %p260, %p261
    %p263 = scmp.ne.s32.totalorder %s255, %s257
    %p264 = scmp.eq.s32.totalorder %s27, 7
    %p265 = por %p263, %p264
    %p266 = scmp.ne.s32.totalorder %s257, %s258
    %p267 = scmp.eq.s32.totalorder %s27, 0
    %p268 = por %p266, %p267
    %p269 = scmp.ne.s32.totalorder %s257, %s258
    %p270 = scmp.eq.s32.totalorder %s28, 7
    %p271 = por %p269, %p270
    %p273 = scmp.ne.s32.totalorder %s258, %s272
    %p274 = scmp.eq.s32.totalorder %s28, 0
    %p275 = por %p273, %p274
    %s277 = sadd.s32 %s276, 1
    %p280 = scmp.eq.s32.totalorder %s22, 7
    %p281 = scmp.ne.s32.totalorder %s276, %s278
    %p282 = scmp.eq.s32.totalorder %s22, 0
    %p283 = por %p281, %p282
    %p284 = scmp.ne.s32.totalorder %s276, %s278
    %p285 = scmp.eq.s32.totalorder %s27, 7
    %p286 = por %p284, %p285
    %p287 = scmp.ne.s32.totalorder %s278, %s279
    %p288 = scmp.eq.s32.totalorder %s27, 0
    %p289 = por %p287, %p288
    %p290 = scmp.ne.s32.totalorder %s278, %s279
    %p291 = scmp.eq.s32.totalorder %s28, 7
    %p292 = por %p290, %p291
    %p294 = scmp.ne.s32.totalorder %s279, %s293
    %p295 = scmp.eq.s32.totalorder %s28, 0
    %p296 = por %p294, %p295
    %s298 = sadd.s32 %s297, 1
    %p301 = scmp.eq.s32.totalorder %s22, 7
    %p302 = scmp.ne.s32.totalorder %s297, %s299
    %p303 = scmp.eq.s32.totalorder %s22, 0
    %p304 = por %p302, %p303
    %p305 = scmp.ne.s32.totalorder %s297, %s299
    %p306 = scmp.eq.s32.totalorder %s27, 7
    %p307 = por %p305, %p306
    %p308 = scmp.ne.s32.totalorder %s299, %s300
    %p309 = scmp.eq.s32.totalorder %s27, 0
    %p310 = por %p308, %p309
    %p311 = scmp.ne.s32.totalorder %s299, %s300
    %p312 = scmp.eq.s32.totalorder %s28, 7
    %p313 = por %p311, %p312
    %p315 = scmp.ne.s32.totalorder %s300, %s314
    %p316 = scmp.eq.s32.totalorder %s28, 0
    %p317 = por %p315, %p316
    %s319 = sadd.s32 %s318, 1
    %p322 = scmp.eq.s32.totalorder %s22, 7
    %p323 = scmp.ne.s32.totalorder %s318, %s320
    %p324 = scmp.eq.s32.totalorder %s22, 0
    %p325 = por %p323, %p324
    %p326 = scmp.ne.s32.totalorder %s318, %s320
    %p327 = scmp.eq.s32.totalorder %s27, 7
    %p328 = por %p326, %p327
    %p329 = scmp.ne.s32.totalorder %s320, %s321
    %p330 = scmp.eq.s32.totalorder %s27, 0
    %p331 = por %p329, %p330
    %p332 = scmp.ne.s32.totalorder %s320, %s321
    %p333 = scmp.eq.s32.totalorder %s28, 7
    %p334 = por %p332, %p333
    %p336 = scmp.ne.s32.totalorder %s321, %s335
    %p337 = scmp.eq.s32.totalorder %s28, 0
    %p338 = por %p336, %p337
    %s340 = sadd.s32 %s339, 1
    %p343 = scmp.eq.s32.totalorder %s22, 7
    %p344 = scmp.ne.s32.totalorder %s339, %s341
    %p345 = scmp.eq.s32.totalorder %s22, 0
    %p346 = por %p344, %p345
    %p347 = scmp.ne.s32.totalorder %s339, %s341
    %p348 = scmp.eq.s32.totalorder %s27, 7
    %p349 = por %p347, %p348
    %p350 = scmp.ne.s32.totalorder %s341, %s342
    %p351 = scmp.eq.s32.totalorder %s27, 0
    %p352 = por %p350, %p351
    %p353 = scmp.ne.s32.totalorder %s341, %s342
    %p354 = scmp.eq.s32.totalorder %s28, 7
    %p355 = por %p353, %p354
    %p357 = scmp.ne.s32.totalorder %s342, %s356
    %p358 = scmp.eq.s32.totalorder %s28, 0
    %p359 = por %p357, %p358
    %s361 = sadd.s32 %s360, 1
    %p364 = scmp.eq.s32.totalorder %s22, 7
    %p365 = scmp.ne.s32.totalorder %s360, %s362
    %p366 = scmp.eq.s32.totalorder %s22, 0
    %p367 = por %p365, %p366
    %p368 = scmp.ne.s32.totalorder %s360, %s362
    %p369 = scmp.eq.s32.totalorder %s27, 7
    %p370 = por %p368, %p369
    %p371 = scmp.ne.s32.totalorder %s362, %s363
    %p372 = scmp.eq.s32.totalorder %s27, 0
    %p373 = por %p371, %p372
    %p374 = scmp.ne.s32.totalorder %s362, %s363
    %p375 = scmp.eq.s32.totalorder %s28, 7
    %p376 = por %p374, %p375
    %p378 = scmp.ne.s32.totalorder %s363, %s377
    %p379 = scmp.eq.s32.totalorder %s28, 0
    %p380 = por %p378, %p379
    %s381 = ssub.s32 %s22, %s29
    %p382 = scmp.eq.s32.totalorder %s381, 0
    %s384 = sadd.s32 %s383, 1
    %s385 = scalar_select %p382, %s383, %s384
    %p388 = pneg %p382
    %p389 = scmp.eq.s32.totalorder %s22, 7
    %p390 = por %p388, %p389
    %p391 = scmp.ne.s32.totalorder %s383, %s386
    %p392 = scmp.eq.s32.totalorder %s22, 0
    %p393 = por %p391, %p392
    %p394 = scmp.ne.s32.totalorder %s383, %s386
    %p395 = scmp.eq.s32.totalorder %s27, 7
    %p396 = por %p394, %p395
    %p397 = scmp.ne.s32.totalorder %s386, %s387
    %p398 = scmp.eq.s32.totalorder %s27, 0
    %p399 = por %p397, %p398
    %p400 = scmp.ne.s32.totalorder %s386, %s387
    %p401 = scmp.eq.s32.totalorder %s28, 7
    %p402 = por %p400, %p401
    %p404 = scmp.ne.s32.totalorder %s387, %s403
    %p405 = scmp.eq.s32.totalorder %s28, 0
    %p406 = por %p404, %p405
    %p407 = scmp.le.s32.totalorder 1, %s22
    %p408 = scmp.lt.s32.totalorder %s22, 9
    %p409 = pnand %p407, %p408
    %p410 = pneg %p409
    // Predicated region
    $region9: #{motif_aware_capnn_forward_batched.1} parent=5 // pred_check
      _
    $region10: #{motif_aware_capnn_forward_batched.1} parent=5 // pred_check_branch
      %412 = sbr.rel (%p409) target = $region12
    $region11: #{motif_aware_capnn_forward_batched.1} parent=5 // pred_region
      %s413 = ssub.s32 %s22, 1
      // Predicated region
      $region13: #{motif_aware_capnn_forward_batched.1} parent=11 // pred_check
        %p414 = pneg %p121
      $region14: #{motif_aware_capnn_forward_batched.1} parent=11 // pred_check_branch
        %416 = sbr.rel (%p414) target = $region16
      $region15: #{motif_aware_capnn_forward_batched.1} parent=11 // pred_region
        _
      $region16: #{motif_aware_capnn_forward_batched.1} parent=11 // pred_fallthru
        _
      // Predicated region
      $region17: #{motif_aware_capnn_forward_batched.1} parent=11 // pred_check
        %p417 = pneg %p142
      $region18: #{motif_aware_capnn_forward_batched.1} parent=11 // pred_check_branch
        %419 = sbr.rel (%p417) target = $region20
      $region19: #{motif_aware_capnn_forward_batched.1} parent=11 // pred_region
        _
      $region20: #{motif_aware_capnn_forward_batched.1} parent=11 // pred_fallthru
        _
      // Predicated region
      $region21: #{motif_aware_capnn_forward_batched.1} parent=11 // pred_check
        %p420 = pneg %p163
      $region22: #{motif_aware_capnn_forward_batched.1} parent=11 // pred_check_branch
        %422 = sbr.rel (%p420) target = $region24
      $region23: #{motif_aware_capnn_forward_batched.1} parent=11 // pred_region
        _
      $region24: #{motif_aware_capnn_forward_batched.1} parent=11 // pred_fallthru
        _
      // Predicated region
      $region25: #{motif_aware_capnn_forward_batched.1} parent=11 // pred_check
        %p423 = pneg %p184
      $region26: #{motif_aware_capnn_forward_batched.1} parent=11 // pred_check_branch
        %425 = sbr.rel (%p423) target = $region28
      $region27: #{motif_aware_capnn_forward_batched.1} parent=11 // pred_region
        _
      $region28: #{motif_aware_capnn_forward_batched.1} parent=11 // pred_fallthru
        _
      // Predicated region
      $region29: #{motif_aware_capnn_forward_batched.1} parent=11 // pred_check
        %p426 = pneg %p205
      $region30: #{motif_aware_capnn_forward_batched.1} parent=11 // pred_check_branch
        %428 = sbr.rel (%p426) target = $region32
      $region31: #{motif_aware_capnn_forward_batched.1} parent=11 // pred_region
        _
      $region32: #{motif_aware_capnn_forward_batched.1} parent=11 // pred_fallthru
        _
      // Predicated region
      $region33: #{motif_aware_capnn_forward_batched.1} parent=11 // pred_check
        %p429 = pneg %p226
      $region34: #{motif_aware_capnn_forward_batched.1} parent=11 // pred_check_branch
        %431 = sbr.rel (%p429) target = $region36
      $region35: #{motif_aware_capnn_forward_batched.1} parent=11 // pred_region
        _
      $region36: #{motif_aware_capnn_forward_batched.1} parent=11 // pred_fallthru
        _
      // Predicated region
      $region37: #{motif_aware_capnn_forward_batched.1} parent=11 // pred_check
        %p432 = pneg %p247
      $region38: #{motif_aware_capnn_forward_batched.1} parent=11 // pred_check_branch
        %434 = sbr.rel (%p432) target = $region40
      $region39: #{motif_aware_capnn_forward_batched.1} parent=11 // pred_region
        _
      $region40: #{motif_aware_capnn_forward_batched.1} parent=11 // pred_fallthru
        _
      // Predicated region
      $region41: #{motif_aware_capnn_forward_batched.1} parent=11 // pred_check
        %p435 = pneg %p268
      $region42: #{motif_aware_capnn_forward_batched.1} parent=11 // pred_check_branch
        %437 = sbr.rel (%p435) target = $region44
      $region43: #{motif_aware_capnn_forward_batched.1} parent=11 // pred_region
        _
      $region44: #{motif_aware_capnn_forward_batched.1} parent=11 // pred_fallthru
        _
      // Predicated region
      $region45: #{motif_aware_capnn_forward_batched.1} parent=11 // pred_check
        %p438 = pneg %p289
      $region46: #{motif_aware_capnn_forward_batched.1} parent=11 // pred_check_branch
        %440 = sbr.rel (%p438) target = $region48
      $region47: #{motif_aware_capnn_forward_batched.1} parent=11 // pred_region
        _
      $region48: #{motif_aware_capnn_forward_batched.1} parent=11 // pred_fallthru
        _
      // Predicated region
      $region49: #{motif_aware_capnn_forward_batched.1} parent=11 // pred_check
        %p441 = pneg %p310
      $region50: #{motif_aware_capnn_forward_batched.1} parent=11 // pred_check_branch
        %443 = sbr.rel (%p441) target = $region52
      $region51: #{motif_aware_capnn_forward_batched.1} parent=11 // pred_region
        _
      $region52: #{motif_aware_capnn_forward_batched.1} parent=11 // pred_fallthru
        _
      // Predicated region
      $region53: #{motif_aware_capnn_forward_batched.1} parent=11 // pred_check
        %p444 = pneg %p331
      $region54: #{motif_aware_capnn_forward_batched.1} parent=11 // pred_check_branch
        %446 = sbr.rel (%p444) target = $region56
      $region55: #{motif_aware_capnn_forward_batched.1} parent=11 // pred_region
        _
      $region56: #{motif_aware_capnn_forward_batched.1} parent=11 // pred_fallthru
        _
      // Predicated region
      $region57: #{motif_aware_capnn_forward_batched.1} parent=11 // pred_check
        %p447 = pneg %p352
      $region58: #{motif_aware_capnn_forward_batched.1} parent=11 // pred_check_branch
        %449 = sbr.rel (%p447) target = $region60
      $region59: #{motif_aware_capnn_forward_batched.1} parent=11 // pred_region
        _
      $region60: #{motif_aware_capnn_forward_batched.1} parent=11 // pred_fallthru
        _
      // Predicated region
      $region61: #{motif_aware_capnn_forward_batched.1} parent=11 // pred_check
        %p450 = pneg %p373
      $region62: #{motif_aware_capnn_forward_batched.1} parent=11 // pred_check_branch
        %452 = sbr.rel (%p450) target = $region64
      $region63: #{motif_aware_capnn_forward_batched.1} parent=11 // pred_region
        _
      $region64: #{motif_aware_capnn_forward_batched.1} parent=11 // pred_fallthru
        _
    $region12: #{motif_aware_capnn_forward_batched.1} parent=5 // pred_fallthru
      _
    %p453 = scmp.lt.s32.totalorder %s22, 8
    // Predicated region
    $region65: #{motif_aware_capnn_forward_batched.1} parent=5 // pred_check
      %p454 = pneg %p453
    $region66: #{motif_aware_capnn_forward_batched.1} parent=5 // pred_check_branch
      %456 = sbr.rel (%p454) target = $region68
    $region67: #{motif_aware_capnn_forward_batched.1} parent=5 // pred_region
      // Predicated region
      $region69: #{motif_aware_capnn_forward_batched.1} parent=67 // pred_check
        %p457 = pneg %p42
      $region70: #{motif_aware_capnn_forward_batched.1} parent=67 // pred_check_branch
        %459 = sbr.rel (%p457) target = $region72
      $region71: #{motif_aware_capnn_forward_batched.1} parent=67 // pred_region
        %p460 = scmp.lt.s32.totalorder %s22, 7
        %s461 = scalar_select %p460, %s22, 7
        %s462 = smul.addr %s461, 2
        %s463 = smul.addr %s462, 8
        %s464 = scalar_lea.vmem %s0, %s463
      $region72: #{motif_aware_capnn_forward_batched.1} parent=67 // pred_fallthru
        _
      // Predicated region
      $region73: #{motif_aware_capnn_forward_batched.1} parent=67 // pred_check
        %p465 = pneg %p68
      $region74: #{motif_aware_capnn_forward_batched.1} parent=67 // pred_check_branch
        %467 = sbr.rel (%p465) target = $region76
      $region75: #{motif_aware_capnn_forward_batched.1} parent=67 // pred_region
        %p468 = scmp.lt.s32.totalorder %s22, 7
        %s469 = scalar_select %p468, %s22, 7
        %s470 = smul.addr %s469, 6
        %s471 = smul.addr %s470, 8
        %s472 = scalar_lea.vmem %s1, %s471
      $region76: #{motif_aware_capnn_forward_batched.1} parent=67 // pred_fallthru
        _
      // Predicated region
      $region77: #{motif_aware_capnn_forward_batched.1} parent=67 // pred_check
        %p473 = pneg %p94
      $region78: #{motif_aware_capnn_forward_batched.1} parent=67 // pred_check_branch
        %475 = sbr.rel (%p473) target = $region80
      $region79: #{motif_aware_capnn_forward_batched.1} parent=67 // pred_region
        %p476 = scmp.lt.s32.totalorder %s22, 7
        %s477 = scalar_select %p476, %s22, 7
        %s478 = smul.addr %s477, 6
        %s479 = smul.addr %s478, 8
        %s480 = scalar_lea.vmem %s2, %s479
      $region80: #{motif_aware_capnn_forward_batched.1} parent=67 // pred_fallthru
        _
    $region68: #{motif_aware_capnn_forward_batched.1} parent=5 // pred_fallthru
      _
    %p481 = scmp.le.s32.totalorder 1, %s22
    %p482 = scmp.lt.s32.totalorder %s22, 9
    %p483 = pnand %p481, %p482
    %p484 = pneg %p483
    // Predicated region
    $region81: #{motif_aware_capnn_forward_batched.1} parent=5 // pred_check
      _
    $region82: #{motif_aware_capnn_forward_batched.1} parent=5 // pred_check_branch
      %486 = sbr.rel (%p483) target = $region84
    $region83: #{motif_aware_capnn_forward_batched.1} parent=5 // pred_region
      %s487 = ssub.s32 %s22, 1
      %p488 = scmp.lt.s32.totalorder %s27, 7
      %s489 = scalar_select %p488, %s27, 7
      %s490 = smul.addr %s489, 2
      %s491 = smul.addr %s490, 8
      %s492 = scalar_lea.vmem %s0, %s491
      %p493 = pneg %p48
      %p494 = pneg %p45
      %p495 = scmp.lt.s32.totalorder %s27, 7
      %s496 = scalar_select %p495, %s27, 7
      %s497 = smul.addr %s496, 6
      %s498 = smul.addr %s497, 8
      %s499 = scalar_lea.vmem %s1, %s498
      %p500 = pneg %p74
      %p501 = pneg %p71
      %p502 = scmp.lt.s32.totalorder %s27, 7
      %s503 = scalar_select %p502, %s27, 7
      %s504 = smul.addr %s503, 6
      %s505 = smul.addr %s504, 8
      %s506 = scalar_lea.vmem %s2, %s505
      %p507 = pneg %p100
      %p508 = pneg %p97
      %p509 = pneg %p121
      %p510 = pneg %p118
      %p511 = pneg %p142
      %p512 = pneg %p139
      %p513 = pneg %p163
      %p514 = pneg %p160
      %p515 = pneg %p184
      %p516 = pneg %p181
      %p517 = pneg %p205
      %p518 = pneg %p202
      %p519 = pneg %p226
      %p520 = pneg %p223
      %p521 = pneg %p247
      %p522 = pneg %p244
      %p523 = pneg %p268
      %p524 = pneg %p265
      %p525 = pneg %p289
      %p526 = pneg %p286
      %p527 = pneg %p310
      %p528 = pneg %p307
      %p529 = pneg %p331
      %p530 = pneg %p328
      %p531 = pneg %p352
      %p532 = pneg %p349
      %p533 = pneg %p373
      %p534 = pneg %p370
      %p535 = pneg %p399
      %p536 = pneg %p396
      %p537 = scmp.lt.s32.totalorder %s27, 7
      %s538 = scalar_select %p537, %s27, 7
      %s539 = scalar_lea.vmem %s16, %s538
      %p540 = scmp.lt.s32.totalorder %s27, 7
      %s541 = scalar_select %p540, %s27, 7
      %s542 = smul.addr %s541, 2
      %s543 = smul.addr %s542, 8
      %s544 = scalar_lea.vmem %s0, %s543
      %p545 = scmp.lt.s32.totalorder %s27, 7
      %s546 = scalar_select %p545, %s27, 7
      %s547 = smul.addr %s546, 6
      %s548 = smul.addr %s547, 8
      %s549 = scalar_lea.vmem %s1, %s548
      %p550 = scmp.lt.s32.totalorder %s27, 7
      %s551 = scalar_select %p550, %s27, 7
      %s552 = smul.addr %s551, 6
      %s553 = smul.addr %s552, 8
      %s554 = scalar_lea.vmem %s2, %s553
      %p555 = scmp.lt.s32.totalorder %s27, 7
      %s556 = scalar_select %p555, %s27, 7
      %s557 = scalar_lea.vmem %s16, %s556
      %v558 = vld [vmem:[%s544] sm:$0xff]
      %v559 = vld [vmem:[%s544 + $0x8] sm:$0xff]
      %v560 = vld [vmem:[%s549] sm:$0xff]
      %v561 = vld [vmem:[%s549 + $0x8] sm:$0xff]
      %v562 = vld [vmem:[%s549 + $0x10] sm:$0xff]
      %v563 = vld [vmem:[%s549 + $0x18] sm:$0xff]
      %v564 = vld [vmem:[%s549 + $0x20] sm:$0xff]
      %v565 = vld [vmem:[%s549 + $0x28] sm:$0xff]
      %v566 = vld [vmem:[%s554] sm:$0xff]
      %v567 = vld [vmem:[%s554 + $0x8] sm:$0xff]
      %v568 = vld [vmem:[%s554 + $0x10] sm:$0xff]
      %v569 = vld [vmem:[%s554 + $0x18] sm:$0xff]
      %v570 = vld [vmem:[%s554 + $0x20] sm:$0xff]
      %v571 = vld [vmem:[%s554 + $0x28] sm:$0xff]
      %v572 = vld [vmem:[%s3] sm:$0xff]
      %vm573 = vcmask 64512
      %v575 = vsel %vm573, %v558, 0
      %v578 = vsel %vm573, %v559, 0
      %580 = vmatprep.subr.mxu0 0.0
      %581 = vmatpush1.msra.mxu0 %v572
      %582 = vmatprep.subr.mxu0 0.0
      %583 = vmatpush1.msra.mxu0 0.0
      %584 = vmatprep.subr.mxu0 0.0
      %585 = vmatpush1.msra.mxu0 0.0
      %586 = vmatprep.subr.mxu0 0.0
      %587 = vmatpush1.msra.mxu0 0.0
      %588 = vmatprep.subr.mxu0 0.0
      %589 = vmatpush1.msra.mxu0 0.0
      %590 = vmatprep.subr.mxu0 0.0
      %591 = vmatpush1.msra.mxu0 0.0
      %592 = vmatprep.subr.mxu0 0.0
      %593 = vmatpush1.msra.mxu0 0.0
      %594 = vmatprep.subr.mxu0 0.0
      %595 = vmatpush1.msra.mxu0 0.0
      %596 = vmatprep.subr.mxu0 0.0
      %597 = vmatpush1.msra.mxu0 0.0
      %598 = vmatprep.subr.mxu0 0.0
      %599 = vmatpush1.msra.mxu0 0.0
      %600 = vmatprep.subr.mxu0 0.0
      %601 = vmatpush1.msra.mxu0 0.0
      %602 = vmatprep.subr.mxu0 0.0
      %603 = vmatpush1.msra.mxu0 0.0
      %604 = vmatprep.subr.mxu0 0.0
      %605 = vmatpush1.msra.mxu0 0.0
      %606 = vmatprep.subr.mxu0 0.0
      %607 = vmatpush1.msra.mxu0 0.0
      %608 = vmatprep.subr.mxu0 0.0
      %609 = vmatpush1.msra.mxu0 0.0
      %610 = vmatprep.subr.mxu0 0.0
      %611 = vmatpush1.msra.mxu0 0.0
      %612 = vmatprep.subr.mxu0 0.0
      %613 = vmatpush1.msra.mxu0 0.0
      %614 = vmatprep.subr.mxu0 0.0
      %615 = vmatpush1.msra.mxu0 0.0
      %616 = vmatprep.subr.mxu0 0.0
      %617 = vmatpush1.msra.mxu0 0.0
      %618 = vmatprep.subr.mxu0 0.0
      %619 = vmatpush1.msra.mxu0 0.0
      %620 = vmatprep.subr.mxu0 0.0
      %621 = vmatpush1.msra.mxu0 0.0
      %622 = vmatprep.subr.mxu0 0.0
      %623 = vmatpush1.msra.mxu0 0.0
      %624 = vmatprep.subr.mxu0 0.0
      %625 = vmatpush1.msra.mxu0 0.0
      %626 = vmatprep.subr.mxu0 0.0
      %627 = vmatpush1.msra.mxu0 0.0
      %628 = vmatprep.subr.mxu0 0.0
      %629 = vmatpush1.msra.mxu0 0.0
      %630 = vmatprep.subr.mxu0 0.0
      %631 = vmatpush1.msra.mxu0 0.0
      %632 = vmatprep.subr.mxu0 0.0
      %633 = vmatpush1.msra.mxu0 0.0
      %634 = vmatprep.subr.mxu0 0.0
      %635 = vmatpush1.msra.mxu0 0.0
      %636 = vmatprep.subr.mxu0 0.0
      %637 = vmatpush1.msra.mxu0 0.0
      %638 = vmatprep.subr.mxu0 0.0
      %639 = vmatpush1.msra.mxu0 0.0
      %640 = vmatprep.subr.mxu0 0.0
      %641 = vmatpush1.msra.mxu0 0.0
      %642 = vmatprep.subr.mxu0 0.0
      %643 = vmatpush1.msra.mxu0 0.0
      %644 = vmatprep.mubr.f32.mxu0 0.0
      %645 = vmatmul.mubr.f32.gmra.mrb[0].mxu0 %v575
      %v646 = vpop.f32.mrb[0].mxu0
      %v647 = vadd.f32 0.0, %v646
      %v648 = vpop.f32.mrb[0].mxu0
      %649 = vmatprep.mubr.f32.mxu0 0.0
      %650 = vmatmul.mubr.f32.gmra.mrb[0].mxu0 %v578
      %v651 = vpop.f32.mrb[0].mxu0
      %v652 = vadd.f32 0.0, %v651
      %v653 = vpop.f32.mrb[0].mxu0
      %654 = vdwg.mxu0
      %vm655 = vcmask 130048
      %v657 = vsel %vm655, %v560, 0
      %v660 = vsel %vm655, %v561, 0
      %v663 = vsel %vm655, %v562, 0
      %v666 = vsel %vm655, %v563, 0
      %v669 = vsel %vm655, %v564, 0
      %v672 = vsel %vm655, %v565, 0
      %674 = vmatprep.subr.mxu0 0.0
      %675 = vmatpush1.msra.mxu0 %v647
      %676 = vmatprep.subr.mxu0 0.0
      %677 = vmatpush1.msra.mxu0 %v652
      %678 = vmatprep.subr.mxu0 0.0
      %679 = vmatpush1.msra.mxu0 0.0
      %680 = vmatprep.subr.mxu0 0.0
      %681 = vmatpush1.msra.mxu0 0.0
      %682 = vmatprep.subr.mxu0 0.0
      %683 = vmatpush1.msra.mxu0 0.0
      %684 = vmatprep.subr.mxu0 0.0
      %685 = vmatpush1.msra.mxu0 0.0
      %686 = vmatprep.subr.mxu0 0.0
      %687 = vmatpush1.msra.mxu0 0.0
      %688 = vmatprep.subr.mxu0 0.0
      %689 = vmatpush1.msra.mxu0 0.0
      %690 = vmatprep.subr.mxu0 0.0
      %691 = vmatpush1.msra.mxu0 0.0
      %692 = vmatprep.subr.mxu0 0.0
      %693 = vmatpush1.msra.mxu0 0.0
      %694 = vmatprep.subr.mxu0 0.0
      %695 = vmatpush1.msra.mxu0 0.0
      %696 = vmatprep.subr.mxu0 0.0
      %697 = vmatpush1.msra.mxu0 0.0
      %698 = vmatprep.subr.mxu0 0.0
      %699 = vmatpush1.msra.mxu0 0.0
      %700 = vmatprep.subr.mxu0 0.0
      %701 = vmatpush1.msra.mxu0 0.0
      %702 = vmatprep.subr.mxu0 0.0
      %703 = vmatpush1.msra.mxu0 0.0
      %704 = vmatprep.subr.mxu0 0.0
      %705 = vmatpush1.msra.mxu0 0.0
      %706 = vmatprep.subr.mxu0 0.0
      %707 = vmatpush1.msra.mxu0 0.0
      %708 = vmatprep.subr.mxu0 0.0
      %709 = vmatpush1.msra.mxu0 0.0
      %710 = vmatprep.subr.mxu0 0.0
      %711 = vmatpush1.msra.mxu0 0.0
      %712 = vmatprep.subr.mxu0 0.0
      %713 = vmatpush1.msra.mxu0 0.0
      %714 = vmatprep.subr.mxu0 0.0
      %715 = vmatpush1.msra.mxu0 0.0
      %716 = vmatprep.subr.mxu0 0.0
      %717 = vmatpush1.msra.mxu0 0.0
      %718 = vmatprep.subr.mxu0 0.0
      %719 = vmatpush1.msra.mxu0 0.0
      %720 = vmatprep.subr.mxu0 0.0
      %721 = vmatpush1.msra.mxu0 0.0
      %722 = vmatprep.subr.mxu0 0.0
      %723 = vmatpush1.msra.mxu0 0.0
      %724 = vmatprep.subr.mxu0 0.0
      %725 = vmatpush1.msra.mxu0 0.0
      %726 = vmatprep.subr.mxu0 0.0
      %727 = vmatpush1.msra.mxu0 0.0
      %728 = vmatprep.subr.mxu0 0.0
      %729 = vmatpush1.msra.mxu0 0.0
      %730 = vmatprep.subr.mxu0 0.0
      %731 = vmatpush1.msra.mxu0 0.0
      %732 = vmatprep.subr.mxu0 0.0
      %733 = vmatpush1.msra.mxu0 0.0
      %734 = vmatprep.subr.mxu0 0.0
      %735 = vmatpush1.msra.mxu0 0.0
      %736 = vmatprep.subr.mxu0 0.0
      %737 = vmatpush1.msra.mxu0 0.0
      %738 = vmatprep.mubr.f32.mxu0 0.0
      %739 = vmatmul.mubr.f32.gmra.mrb[0].mxu0 %v657
      %v740 = vpop.f32.mrb[0].mxu0
      %v741 = vadd.f32 0.0, %v740
      %v742 = vpop.f32.mrb[0].mxu0
      %743 = vmatprep.mubr.f32.mxu0 0.0
      %744 = vmatmul.mubr.f32.gmra.mrb[0].mxu0 %v660
      %v745 = vpop.f32.mrb[0].mxu0
      %v746 = vadd.f32 0.0, %v745
      %v747 = vpop.f32.mrb[0].mxu0
      %748 = vmatprep.mubr.f32.mxu0 0.0
      %749 = vmatmul.mubr.f32.gmra.mrb[0].mxu0 %v663
      %v750 = vpop.f32.mrb[0].mxu0
      %v751 = vadd.f32 0.0, %v750
      %v752 = vpop.f32.mrb[0].mxu0
      %753 = vmatprep.mubr.f32.mxu0 0.0
      %754 = vmatmul.mubr.f32.gmra.mrb[0].mxu0 %v666
      %v755 = vpop.f32.mrb[0].mxu0
      %v756 = vadd.f32 0.0, %v755
      %v757 = vpop.f32.mrb[0].mxu0
      %758 = vmatprep.mubr.f32.mxu0 0.0
      %759 = vmatmul.mubr.f32.gmra.mrb[0].mxu0 %v669
      %v760 = vpop.f32.mrb[0].mxu0
      %v761 = vadd.f32 0.0, %v760
      %v762 = vpop.f32.mrb[0].mxu0
      %763 = vmatprep.mubr.f32.mxu0 0.0
      %764 = vmatmul.mubr.f32.gmra.mrb[0].mxu0 %v672
      %v765 = vpop.f32.mrb[0].mxu0
      %v766 = vadd.f32 0.0, %v765
      %v767 = vpop.f32.mrb[0].mxu0
      %768 = vdwg.mxu0
      %v769 = vmax.f32 %v741, 0.0
      %v770 = vmax.f32 %v746, 0.0
      %v771 = vmax.f32 %v751, 0.0
      %v772 = vmax.f32 %v756, 0.0
      %v773 = vmax.f32 %v761, 0.0
      %v774 = vmax.f32 %v766, 0.0
      %vm775 = vcmask 392192
      %v777 = vsel %vm775, %v566, 0
      %v780 = vsel %vm775, %v567, 0
      %v783 = vsel %vm775, %v568, 0
      %v786 = vsel %vm775, %v569, 0
      %v789 = vsel %vm775, %v570, 0
      %v792 = vsel %vm775, %v571, 0
      %794 = vmatprep.subr.mxu0 0.0
      %795 = vmatpush1.msra.mxu0 %v769
      %796 = vmatprep.subr.mxu0 0.0
      %797 = vmatpush1.msra.mxu0 %v770
      %798 = vmatprep.subr.mxu0 0.0
      %799 = vmatpush1.msra.mxu0 %v771
      %800 = vmatprep.subr.mxu0 0.0
      %801 = vmatpush1.msra.mxu0 %v772
      %802 = vmatprep.subr.mxu0 0.0
      %803 = vmatpush1.msra.mxu0 %v773
      %804 = vmatprep.subr.mxu0 0.0
      %805 = vmatpush1.msra.mxu0 %v774
      %806 = vmatprep.subr.mxu0 0.0
      %807 = vmatpush1.msra.mxu0 0.0
      %808 = vmatprep.subr.mxu0 0.0
      %809 = vmatpush1.msra.mxu0 0.0
      %810 = vmatprep.subr.mxu0 0.0
      %811 = vmatpush1.msra.mxu0 0.0
      %812 = vmatprep.subr.mxu0 0.0
      %813 = vmatpush1.msra.mxu0 0.0
      %814 = vmatprep.subr.mxu0 0.0
      %815 = vmatpush1.msra.mxu0 0.0
      %816 = vmatprep.subr.mxu0 0.0
      %817 = vmatpush1.msra.mxu0 0.0
      %818 = vmatprep.subr.mxu0 0.0
      %819 = vmatpush1.msra.mxu0 0.0
      %820 = vmatprep.subr.mxu0 0.0
      %821 = vmatpush1.msra.mxu0 0.0
      %822 = vmatprep.subr.mxu0 0.0
      %823 = vmatpush1.msra.mxu0 0.0
      %824 = vmatprep.subr.mxu0 0.0
      %825 = vmatpush1.msra.mxu0 0.0
      %826 = vmatprep.subr.mxu0 0.0
      %827 = vmatpush1.msra.mxu0 0.0
      %828 = vmatprep.subr.mxu0 0.0
      %829 = vmatpush1.msra.mxu0 0.0
      %830 = vmatprep.subr.mxu0 0.0
      %831 = vmatpush1.msra.mxu0 0.0
      %832 = vmatprep.subr.mxu0 0.0
      %833 = vmatpush1.msra.mxu0 0.0
      %834 = vmatprep.subr.mxu0 0.0
      %835 = vmatpush1.msra.mxu0 0.0
      %836 = vmatprep.subr.mxu0 0.0
      %837 = vmatpush1.msra.mxu0 0.0
      %838 = vmatprep.subr.mxu0 0.0
      %839 = vmatpush1.msra.mxu0 0.0
      %840 = vmatprep.subr.mxu0 0.0
      %841 = vmatpush1.msra.mxu0 0.0
      %842 = vmatprep.subr.mxu0 0.0
      %843 = vmatpush1.msra.mxu0 0.0
      %844 = vmatprep.subr.mxu0 0.0
      %845 = vmatpush1.msra.mxu0 0.0
      %846 = vmatprep.subr.mxu0 0.0
      %847 = vmatpush1.msra.mxu0 0.0
      %848 = vmatprep.subr.mxu0 0.0
      %849 = vmatpush1.msra.mxu0 0.0
      %850 = vmatprep.subr.mxu0 0.0
      %851 = vmatpush1.msra.mxu0 0.0
      %852 = vmatprep.subr.mxu0 0.0
      %853 = vmatpush1.msra.mxu0 0.0
      %854 = vmatprep.subr.mxu0 0.0
      %855 = vmatpush1.msra.mxu0 0.0
      %856 = vmatprep.subr.mxu0 0.0
      %857 = vmatpush1.msra.mxu0 0.0
      %858 = vmatprep.mubr.f32.mxu0 0.0
      %859 = vmatmul.mubr.f32.gmra.mrb[0].mxu0 %v777
      %v860 = vpop.f32.mrb[0].mxu0
      %v861 = vadd.f32 0.0, %v860
      %v862 = vpop.f32.mrb[0].mxu0
      %863 = vmatprep.mubr.f32.mxu0 0.0
      %864 = vmatmul.mubr.f32.gmra.mrb[0].mxu0 %v780
      %v865 = vpop.f32.mrb[0].mxu0
      %v866 = vadd.f32 0.0, %v865
      %v867 = vpop.f32.mrb[0].mxu0
      %868 = vmatprep.mubr.f32.mxu0 0.0
      %869 = vmatmul.mubr.f32.gmra.mrb[0].mxu0 %v783
      %v870 = vpop.f32.mrb[0].mxu0
      %v871 = vadd.f32 0.0, %v870
      %v872 = vpop.f32.mrb[0].mxu0
      %873 = vmatprep.mubr.f32.mxu0 0.0
      %874 = vmatmul.mubr.f32.gmra.mrb[0].mxu0 %v786
      %v875 = vpop.f32.mrb[0].mxu0
      %v876 = vadd.f32 0.0, %v875
      %v877 = vpop.f32.mrb[0].mxu0
      %878 = vmatprep.mubr.f32.mxu0 0.0
      %879 = vmatmul.mubr.f32.gmra.mrb[0].mxu0 %v789
      %v880 = vpop.f32.mrb[0].mxu0
      %v881 = vadd.f32 0.0, %v880
      %v882 = vpop.f32.mrb[0].mxu0
      %883 = vmatprep.mubr.f32.mxu0 0.0
      %884 = vmatmul.mubr.f32.gmra.mrb[0].mxu0 %v792
      %v885 = vpop.f32.mrb[0].mxu0
      %v886 = vadd.f32 0.0, %v885
      %v887 = vpop.f32.mrb[0].mxu0
      %888 = vdwg.mxu0
      %v889 = vld [vmem:[%s4] sm:$0xff]
      %v890 = vld [vmem:[%s4 + $0x8] sm:$0xff]
      %v892 = vsel %vm655, %v861, 0
      %v895 = vsel %vm655, %v866, 0
      %v898 = vsel %vm655, %v871, 0
      %v901 = vsel %vm655, %v876, 0
      %v904 = vsel %vm655, %v881, 0
      %v907 = vsel %vm655, %v886, 0
      %909 = vmatprep.subr.mxu0 0.0
      %910 = vmatpush1.msra.mxu0 %v889
      %911 = vmatprep.subr.mxu0 0.0
      %912 = vmatpush1.msra.mxu0 %v890
      %913 = vmatprep.subr.mxu0 0.0
      %914 = vmatpush1.msra.mxu0 0.0
      %915 = vmatprep.subr.mxu0 0.0
      %916 = vmatpush1.msra.mxu0 0.0
      %917 = vmatprep.subr.mxu0 0.0
      %918 = vmatpush1.msra.mxu0 0.0
      %919 = vmatprep.subr.mxu0 0.0
      %920 = vmatpush1.msra.mxu0 0.0
      %921 = vmatprep.subr.mxu0 0.0
      %922 = vmatpush1.msra.mxu0 0.0
      %923 = vmatprep.subr.mxu0 0.0
      %924 = vmatpush1.msra.mxu0 0.0
      %925 = vmatprep.subr.mxu0 0.0
      %926 = vmatpush1.msra.mxu0 0.0
      %927 = vmatprep.subr.mxu0 0.0
      %928 = vmatpush1.msra.mxu0 0.0
      %929 = vmatprep.subr.mxu0 0.0
      %930 = vmatpush1.msra.mxu0 0.0
      %931 = vmatprep.subr.mxu0 0.0
      %932 = vmatpush1.msra.mxu0 0.0
      %933 = vmatprep.subr.mxu0 0.0
      %934 = vmatpush1.msra.mxu0 0.0
      %935 = vmatprep.subr.mxu0 0.0
      %936 = vmatpush1.msra.mxu0 0.0
      %937 = vmatprep.subr.mxu0 0.0
      %938 = vmatpush1.msra.mxu0 0.0
      %939 = vmatprep.subr.mxu0 0.0
      %940 = vmatpush1.msra.mxu0 0.0
      %941 = vmatprep.subr.mxu0 0.0
      %942 = vmatpush1.msra.mxu0 0.0
      %943 = vmatprep.subr.mxu0 0.0
      %944 = vmatpush1.msra.mxu0 0.0
      %945 = vmatprep.subr.mxu0 0.0
      %946 = vmatpush1.msra.mxu0 0.0
      %947 = vmatprep.subr.mxu0 0.0
      %948 = vmatpush1.msra.mxu0 0.0
      %949 = vmatprep.subr.mxu0 0.0
      %950 = vmatpush1.msra.mxu0 0.0
      %951 = vmatprep.subr.mxu0 0.0
      %952 = vmatpush1.msra.mxu0 0.0
      %953 = vmatprep.subr.mxu0 0.0
      %954 = vmatpush1.msra.mxu0 0.0
      %955 = vmatprep.subr.mxu0 0.0
      %956 = vmatpush1.msra.mxu0 0.0
      %957 = vmatprep.subr.mxu0 0.0
      %958 = vmatpush1.msra.mxu0 0.0
      %959 = vmatprep.subr.mxu0 0.0
      %960 = vmatpush1.msra.mxu0 0.0
      %961 = vmatprep.subr.mxu0 0.0
      %962 = vmatpush1.msra.mxu0 0.0
      %963 = vmatprep.subr.mxu0 0.0
      %964 = vmatpush1.msra.mxu0 0.0
      %965 = vmatprep.subr.mxu0 0.0
      %966 = vmatpush1.msra.mxu0 0.0
      %967 = vmatprep.subr.mxu0 0.0
      %968 = vmatpush1.msra.mxu0 0.0
      %969 = vmatprep.subr.mxu0 0.0
      %970 = vmatpush1.msra.mxu0 0.0
      %971 = vmatprep.subr.mxu0 0.0
      %972 = vmatpush1.msra.mxu0 0.0
      %973 = vmatprep.mubr.f32.mxu0 0.0
      %974 = vmatmul.mubr.f32.gmra.mrb[0].mxu0 %v892
      %v975 = vpop.f32.mrb[0].mxu0
      %v976 = vadd.f32 0.0, %v975
      %v977 = vpop.f32.mrb[0].mxu0
      %978 = vmatprep.mubr.f32.mxu0 0.0
      %979 = vmatmul.mubr.f32.gmra.mrb[0].mxu0 %v895
      %v980 = vpop.f32.mrb[0].mxu0
      %v981 = vadd.f32 0.0, %v980
      %v982 = vpop.f32.mrb[0].mxu0
      %983 = vmatprep.mubr.f32.mxu0 0.0
      %984 = vmatmul.mubr.f32.gmra.mrb[0].mxu0 %v898
      %v985 = vpop.f32.mrb[0].mxu0
      %v986 = vadd.f32 0.0, %v985
      %v987 = vpop.f32.mrb[0].mxu0
      %988 = vmatprep.mubr.f32.mxu0 0.0
      %989 = vmatmul.mubr.f32.gmra.mrb[0].mxu0 %v901
      %v990 = vpop.f32.mrb[0].mxu0
      %v991 = vadd.f32 0.0, %v990
      %v992 = vpop.f32.mrb[0].mxu0
      %993 = vmatprep.mubr.f32.mxu0 0.0
      %994 = vmatmul.mubr.f32.gmra.mrb[0].mxu0 %v904
      %v995 = vpop.f32.mrb[0].mxu0
      %v996 = vadd.f32 0.0, %v995
      %v997 = vpop.f32.mrb[0].mxu0
      %998 = vmatprep.mubr.f32.mxu0 0.0
      %999 = vmatmul.mubr.f32.gmra.mrb[0].mxu0 %v907
      %v1000 = vpop.f32.mrb[0].mxu0
      %v1001 = vadd.f32 0.0, %v1000
      %v1002 = vpop.f32.mrb[0].mxu0
      %1003 = vdwg.mxu0
      %v1004 = vmax.f32 %v976, 0.0
      %v1005 = vmax.f32 %v981, 0.0
      %v1006 = vmax.f32 %v986, 0.0
      %v1007 = vmax.f32 %v991, 0.0
      %v1008 = vmax.f32 %v996, 0.0
      %v1009 = vmax.f32 %v1001, 0.0
      %v1010 = vld [vmem:[%s5] sm:$0xff]
      %v1011 = vld [vmem:[%s5 + $0x8] sm:$0xff]
      %1012 = vmatprep.subr.mxu0 0.0
      %1013 = vmatpush1.msra.mxu0 %v1010
      %1014 = vmatprep.subr.mxu0 0.0
      %1015 = vmatpush1.msra.mxu0 %v1011
      %1016 = vmatprep.subr.mxu0 0.0
      %1017 = vmatpush1.msra.mxu0 0.0
      %1018 = vmatprep.subr.mxu0 0.0
      %1019 = vmatpush1.msra.mxu0 0.0
      %1020 = vmatprep.subr.mxu0 0.0
      %1021 = vmatpush1.msra.mxu0 0.0
      %1022 = vmatprep.subr.mxu0 0.0
      %1023 = vmatpush1.msra.mxu0 0.0
      %1024 = vmatprep.subr.mxu0 0.0
      %1025 = vmatpush1.msra.mxu0 0.0
      %1026 = vmatprep.subr.mxu0 0.0
      %1027 = vmatpush1.msra.mxu0 0.0
      %1028 = vmatprep.subr.mxu0 0.0
      %1029 = vmatpush1.msra.mxu0 0.0
      %1030 = vmatprep.subr.mxu0 0.0
      %1031 = vmatpush1.msra.mxu0 0.0
      %1032 = vmatprep.subr.mxu0 0.0
      %1033 = vmatpush1.msra.mxu0 0.0
      %1034 = vmatprep.subr.mxu0 0.0
      %1035 = vmatpush1.msra.mxu0 0.0
      %1036 = vmatprep.subr.mxu0 0.0
      %1037 = vmatpush1.msra.mxu0 0.0
      %1038 = vmatprep.subr.mxu0 0.0
      %1039 = vmatpush1.msra.mxu0 0.0
      %1040 = vmatprep.subr.mxu0 0.0
      %1041 = vmatpush1.msra.mxu0 0.0
      %1042 = vmatprep.subr.mxu0 0.0
      %1043 = vmatpush1.msra.mxu0 0.0
      %1044 = vmatprep.subr.mxu0 0.0
      %1045 = vmatpush1.msra.mxu0 0.0
      %1046 = vmatprep.subr.mxu0 0.0
      %1047 = vmatpush1.msra.mxu0 0.0
      %1048 = vmatprep.subr.mxu0 0.0
      %1049 = vmatpush1.msra.mxu0 0.0
      %1050 = vmatprep.subr.mxu0 0.0
      %1051 = vmatpush1.msra.mxu0 0.0
      %1052 = vmatprep.subr.mxu0 0.0
      %1053 = vmatpush1.msra.mxu0 0.0
      %1054 = vmatprep.subr.mxu0 0.0
      %1055 = vmatpush1.msra.mxu0 0.0
      %1056 = vmatprep.subr.mxu0 0.0
      %1057 = vmatpush1.msra.mxu0 0.0
      %1058 = vmatprep.subr.mxu0 0.0
      %1059 = vmatpush1.msra.mxu0 0.0
      %1060 = vmatprep.subr.mxu0 0.0
      %1061 = vmatpush1.msra.mxu0 0.0
      %1062 = vmatprep.subr.mxu0 0.0
      %1063 = vmatpush1.msra.mxu0 0.0
      %1064 = vmatprep.subr.mxu0 0.0
      %1065 = vmatpush1.msra.mxu0 0.0
      %1066 = vmatprep.subr.mxu0 0.0
      %1067 = vmatpush1.msra.mxu0 0.0
      %1068 = vmatprep.subr.mxu0 0.0
      %1069 = vmatpush1.msra.mxu0 0.0
      %1070 = vmatprep.subr.mxu0 0.0
      %1071 = vmatpush1.msra.mxu0 0.0
      %1072 = vmatprep.subr.mxu0 0.0
      %1073 = vmatpush1.msra.mxu0 0.0
      %1074 = vmatprep.subr.mxu0 0.0
      %1075 = vmatpush1.msra.mxu0 0.0
      %1076 = vmatprep.mubr.f32.mxu0 0.0
      %1077 = vmatmul.mubr.f32.gmra.mrb[0].mxu0 %v892
      %v1078 = vpop.f32.mrb[0].mxu0
      %v1079 = vadd.f32 0.0, %v1078
      %v1080 = vpop.f32.mrb[0].mxu0
      %1081 = vmatprep.mubr.f32.mxu0 0.0
      %1082 = vmatmul.mubr.f32.gmra.mrb[0].mxu0 %v895
      %v1083 = vpop.f32.mrb[0].mxu0
      %v1084 = vadd.f32 0.0, %v1083
      %v1085 = vpop.f32.mrb[0].mxu0
      %1086 = vmatprep.mubr.f32.mxu0 0.0
      %1087 = vmatmul.mubr.f32.gmra.mrb[0].mxu0 %v898
      %v1088 = vpop.f32.mrb[0].mxu0
      %v1089 = vadd.f32 0.0, %v1088
      %v1090 = vpop.f32.mrb[0].mxu0
      %1091 = vmatprep.mubr.f32.mxu0 0.0
      %1092 = vmatmul.mubr.f32.gmra.mrb[0].mxu0 %v901
      %v1093 = vpop.f32.mrb[0].mxu0
      %v1094 = vadd.f32 0.0, %v1093
      %v1095 = vpop.f32.mrb[0].mxu0
      %1096 = vmatprep.mubr.f32.mxu0 0.0
      %1097 = vmatmul.mubr.f32.gmra.mrb[0].mxu0 %v904
      %v1098 = vpop.f32.mrb[0].mxu0
      %v1099 = vadd.f32 0.0, %v1098
      %v1100 = vpop.f32.mrb[0].mxu0
      %1101 = vmatprep.mubr.f32.mxu0 0.0
      %1102 = vmatmul.mubr.f32.gmra.mrb[0].mxu0 %v907
      %v1103 = vpop.f32.mrb[0].mxu0
      %v1104 = vadd.f32 0.0, %v1103
      %v1105 = vpop.f32.mrb[0].mxu0
      %1106 = vdwg.mxu0
      %vm1107 = vcmask 31744
      %v1108 = vsel %vm1107, %v1079, -inf
      %1109 = vmax.xlane.f32.xlu0 %v1108
      %v1110 = vpop.xlane.xlu0 %1109
      %v1111 = vsel %vm1107, %v1084, -inf
      %1112 = vmax.xlane.f32.xlu0 %v1111
      %v1113 = vpop.xlane.xlu0 %1112
      %v1114 = vsel %vm1107, %v1089, -inf
      %1115 = vmax.xlane.f32.xlu0 %v1114
      %v1116 = vpop.xlane.xlu0 %1115
      %v1117 = vsel %vm1107, %v1094, -inf
      %1118 = vmax.xlane.f32.xlu0 %v1117
      %v1119 = vpop.xlane.xlu0 %1118
      %v1120 = vsel %vm1107, %v1099, -inf
      %1121 = vmax.xlane.f32.xlu0 %v1120
      %v1122 = vpop.xlane.xlu0 %1121
      %v1123 = vsel %vm1107, %v1104, -inf
      %1124 = vmax.xlane.f32.xlu0 %v1123
      %v1125 = vpop.xlane.xlu0 %1124
      %v1126 = vsub.f32 %v1079, %v1110
      %v1127 = vsub.f32 %v1084, %v1113
      %v1128 = vsub.f32 %v1089, %v1116
      %v1129 = vsub.f32 %v1094, %v1119
      %v1130 = vsub.f32 %v1099, %v1122
      %v1131 = vsub.f32 %v1104, %v1125
      %v1132 = vmul.f32 %v1126, 1.442695
      %v1133 = vpow.pop %v1132
      %v1134 = vmul.f32 %v1127, 1.442695
      %v1135 = vpow.pop %v1134
      %v1136 = vmul.f32 %v1128, 1.442695
      %v1137 = vpow.pop %v1136
      %v1138 = vmul.f32 %v1129, 1.442695
      %v1139 = vpow.pop %v1138
      %v1140 = vmul.f32 %v1130, 1.442695
      %v1141 = vpow.pop %v1140
      %v1142 = vmul.f32 %v1131, 1.442695
      %v1143 = vpow.pop %v1142
      %v1144 = vsel %vm1107, %v1133, 0.0
      %1145 = vadd.xlane.f32.xlu0 %v1144
      %v1146 = vpop.xlane.xlu0 %1145
      %v1147 = vsel %vm1107, %v1135, 0.0
      %1148 = vadd.xlane.f32.xlu0 %v1147
      %v1149 = vpop.xlane.xlu0 %1148
      %v1150 = vsel %vm1107, %v1137, 0.0
      %1151 = vadd.xlane.f32.xlu0 %v1150
      %v1152 = vpop.xlane.xlu0 %1151
      %v1153 = vsel %vm1107, %v1139, 0.0
      %1154 = vadd.xlane.f32.xlu0 %v1153
      %v1155 = vpop.xlane.xlu0 %1154
      %v1156 = vsel %vm1107, %v1141, 0.0
      %1157 = vadd.xlane.f32.xlu0 %v1156
      %v1158 = vpop.xlane.xlu0 %1157
      %v1159 = vsel %vm1107, %v1143, 0.0
      %1160 = vadd.xlane.f32.xlu0 %v1159
      %v1161 = vpop.xlane.xlu0 %1160
      %v1162 = vrcp.pop %v1146
      %v1163 = vrcp.pop %v1149
      %v1164 = vrcp.pop %v1152
      %v1165 = vrcp.pop %v1155
      %v1166 = vrcp.pop %v1158
      %v1167 = vrcp.pop %v1161
      %v1168 = vmul.f32 %v1133, %v1162
      %v1169 = vmul.f32 %v1135, %v1163
      %v1170 = vmul.f32 %v1137, %v1164
      %v1171 = vmul.f32 %v1139, %v1165
      %v1172 = vmul.f32 %v1141, %v1166
      %v1173 = vmul.f32 %v1143, %v1167
      %1180 = vrot.lane.b32.xlu0 %v1004, 8
      %v1181 = vpop.permute.xlu0 %1180
      %1182 = vrot.lane.b32.xlu0 %v1005, 8
      %v1183 = vpop.permute.xlu0 %1182
      %1184 = vrot.lane.b32.xlu0 %v1006, 8
      %v1185 = vpop.permute.xlu0 %1184
      %1186 = vrot.lane.b32.xlu0 %v1007, 8
      %v1187 = vpop.permute.xlu0 %1186
      %1188 = vrot.lane.b32.xlu0 %v1008, 8
      %v1189 = vpop.permute.xlu0 %1188
      %1190 = vrot.lane.b32.xlu0 %v1009, 8
      %v1191 = vpop.permute.xlu0 %1190
      %1198 = vrot.lane.b32.xlu0 %v1004, 16
      %v1199 = vpop.permute.xlu0 %1198
      %1200 = vrot.lane.b32.xlu0 %v1005, 16
      %v1201 = vpop.permute.xlu0 %1200
      %1202 = vrot.lane.b32.xlu0 %v1006, 16
      %v1203 = vpop.permute.xlu0 %1202
      %1204 = vrot.lane.b32.xlu0 %v1007, 16
      %v1205 = vpop.permute.xlu0 %1204
      %1206 = vrot.lane.b32.xlu0 %v1008, 16
      %v1207 = vpop.permute.xlu0 %1206
      %1208 = vrot.lane.b32.xlu0 %v1009, 16
      %v1209 = vpop.permute.xlu0 %1208
      %v1216 = vsel %vm573, %v1004, %v1181
      %v1217 = vsel %vm573, %v1005, %v1183
      %v1218 = vsel %vm573, %v1006, %v1185
      %v1219 = vsel %vm573, %v1007, %v1187
      %v1220 = vsel %vm573, %v1008, %v1189
      %v1221 = vsel %vm573, %v1009, %v1191
      %v1222 = vsel %vm655, %v1216, %v1199
      %v1223 = vsel %vm655, %v1217, %v1201
      %v1224 = vsel %vm655, %v1218, %v1203
      %v1225 = vsel %vm655, %v1219, %v1205
      %v1226 = vsel %vm655, %v1220, %v1207
      %v1227 = vsel %vm655, %v1221, %v1209
      %v1228 = vld [vmem:[%s10] sm:$0xff]
      %v1229 = vld [vmem:[%s10 + $0x8] sm:$0xff]
      %v1230 = vld [vmem:[%s10 + $0x10] sm:$0xff]
      %v1231 = vld [vmem:[%s10 + $0x18] sm:$0xff]
      %v1232 = vld [vmem:[%s10 + $0x20] sm:$0xff]
      %v1233 = vld [vmem:[%s10 + $0x28] sm:$0xff]
      %v1234 = vmul.f32 %v1222, %v1228
      %v1235 = vmul.f32 %v1223, %v1229
      %v1236 = vmul.f32 %v1224, %v1230
      %v1237 = vmul.f32 %v1225, %v1231
      %v1238 = vmul.f32 %v1226, %v1232
      %v1239 = vmul.f32 %v1227, %v1233
      %1240 = vxpose.xlu0.b32.start [1/16] %v1168, 128
      %1241 = vxpose.xlu0.b32.cont [2/16] %v1169, 128
      %1242 = vxpose.xlu0.b32.cont [3/16] %v1170, 128
      %1243 = vxpose.xlu0.b32.cont [4/16] %v1171, 128
      %1244 = vxpose.xlu0.b32.cont [5/16] %v1172, 128
      %1245 = vxpose.xlu0.b32.cont [6/16] %v1173, 128
      %1246 = vxpose.xlu0.b32.cont [7/16] 0.0, 128
      %1247 = vxpose.xlu0.b32.cont [8/16] 0.0, 128
      %1248 = vxpose.xlu0.b32.cont [9/16] 0.0, 128
      %1249 = vxpose.xlu0.b32.cont [10/16] 0.0, 128
      %1250 = vxpose.xlu0.b32.cont [11/16] 0.0, 128
      %1251 = vxpose.xlu0.b32.cont [12/16] 0.0, 128
      %1252 = vxpose.xlu0.b32.cont [13/16] 0.0, 128
      %1253 = vxpose.xlu0.b32.cont [14/16] 0.0, 128
      %1254 = vxpose.xlu0.b32.cont [15/16] 0.0, 128
      %1255 = vxpose.xlu0.b32.end [16/16] 0.0, 128
      %v1256 = vpop.trf.xlu0
      %v1257 = vpop.trf.xlu0
      %v1258 = vpop.trf.xlu0
      %v1259 = vpop.trf.xlu0
      %v1260 = vpop.trf.xlu0
      %v1261 = vpop.trf.xlu0
      %v1262 = vpop.trf.xlu0
      %v1263 = vpop.trf.xlu0
      %v1264 = vpop.trf.xlu0
      %v1265 = vpop.trf.xlu0
      %v1266 = vpop.trf.xlu0
      %v1267 = vpop.trf.xlu0
      %v1268 = vpop.trf.xlu0
      %v1269 = vpop.trf.xlu0
      %v1270 = vpop.trf.xlu0
      %v1271 = vpop.trf.xlu0
      %v1273 = vsel %vm775, %v1256, 0
      %1275 = vmatprep.subr.mxu0 0.0
      %1276 = vmatpush1.msra.mxu0 %v1234
      %1277 = vmatprep.subr.mxu0 0.0
      %1278 = vmatpush1.msra.mxu0 %v1235
      %1279 = vmatprep.subr.mxu0 0.0
      %1280 = vmatpush1.msra.mxu0 %v1236
      %1281 = vmatprep.subr.mxu0 0.0
      %1282 = vmatpush1.msra.mxu0 %v1237
      %1283 = vmatprep.subr.mxu0 0.0
      %1284 = vmatpush1.msra.mxu0 %v1238
      %1285 = vmatprep.subr.mxu0 0.0
      %1286 = vmatpush1.msra.mxu0 %v1239
      %1287 = vmatprep.subr.mxu0 0.0
      %1288 = vmatpush1.msra.mxu0 0.0
      %1289 = vmatprep.subr.mxu0 0.0
      %1290 = vmatpush1.msra.mxu0 0.0
      %1291 = vmatprep.subr.mxu0 0.0
      %1292 = vmatpush1.msra.mxu0 0.0
      %1293 = vmatprep.subr.mxu0 0.0
      %1294 = vmatpush1.msra.mxu0 0.0
      %1295 = vmatprep.subr.mxu0 0.0
      %1296 = vmatpush1.msra.mxu0 0.0
      %1297 = vmatprep.subr.mxu0 0.0
      %1298 = vmatpush1.msra.mxu0 0.0
      %1299 = vmatprep.subr.mxu0 0.0
      %1300 = vmatpush1.msra.mxu0 0.0
      %1301 = vmatprep.subr.mxu0 0.0
      %1302 = vmatpush1.msra.mxu0 0.0
      %1303 = vmatprep.subr.mxu0 0.0
      %1304 = vmatpush1.msra.mxu0 0.0
      %1305 = vmatprep.subr.mxu0 0.0
      %1306 = vmatpush1.msra.mxu0 0.0
      %1307 = vmatprep.subr.mxu0 0.0
      %1308 = vmatpush1.msra.mxu0 0.0
      %1309 = vmatprep.subr.mxu0 0.0
      %1310 = vmatpush1.msra.mxu0 0.0
      %1311 = vmatprep.subr.mxu0 0.0
      %1312 = vmatpush1.msra.mxu0 0.0
      %1313 = vmatprep.subr.mxu0 0.0
      %1314 = vmatpush1.msra.mxu0 0.0
      %1315 = vmatprep.subr.mxu0 0.0
      %1316 = vmatpush1.msra.mxu0 0.0
      %1317 = vmatprep.subr.mxu0 0.0
      %1318 = vmatpush1.msra.mxu0 0.0
      %1319 = vmatprep.subr.mxu0 0.0
      %1320 = vmatpush1.msra.mxu0 0.0
      %1321 = vmatprep.subr.mxu0 0.0
      %1322 = vmatpush1.msra.mxu0 0.0
      %1323 = vmatprep.subr.mxu0 0.0
      %1324 = vmatpush1.msra.mxu0 0.0
      %1325 = vmatprep.subr.mxu0 0.0
      %1326 = vmatpush1.msra.mxu0 0.0
      %1327 = vmatprep.subr.mxu0 0.0
      %1328 = vmatpush1.msra.mxu0 0.0
      %1329 = vmatprep.subr.mxu0 0.0
      %1330 = vmatpush1.msra.mxu0 0.0
      %1331 = vmatprep.subr.mxu0 0.0
      %1332 = vmatpush1.msra.mxu0 0.0
      %1333 = vmatprep.subr.mxu0 0.0
      %1334 = vmatpush1.msra.mxu0 0.0
      %1335 = vmatprep.subr.mxu0 0.0
      %1336 = vmatpush1.msra.mxu0 0.0
      %1337 = vmatprep.subr.mxu0 0.0
      %1338 = vmatpush1.msra.mxu0 0.0
      %1339 = vmatprep.mubr.f32.mxu0 0.0
      %1340 = vmatmul.mubr.f32.gmra.mrb[0].mxu0 %v1273
      %v1341 = vpop.f32.mrb[0].mxu0
      %v1342 = vadd.f32 0.0, %v1341
      %v1343 = vpop.f32.mrb[0].mxu0
      %1344 = vdwg.mxu0
      %v1345 = vld [vmem:[%s6] sm:$0xff]
      %v1346 = vld [vmem:[%s6 + $0x8] sm:$0xff]
      %v1347 = vld [vmem:[%s6 + $0x10] sm:$0xff]
      %v1348 = vld [vmem:[%s7] sm:$0x1]
      %v1350 = vlaneseq
      %v1351 = vshrl.u32 %v1350, 7
      %v1352 = vsub.s32 0, %v1351
      %v1353 = vrot.slane %v1348, %v1352
      %vm1355 = vcmask 195584
      %v1357 = vsel %vm1355, %v1342, 0
      %1359 = vmatprep.subr.mxu0 0.0
      %1360 = vmatpush1.msra.mxu0 %v1345
      %1361 = vmatprep.subr.mxu0 0.0
      %1362 = vmatpush1.msra.mxu0 %v1346
      %1363 = vmatprep.subr.mxu0 0.0
      %1364 = vmatpush1.msra.mxu0 %v1347
      %1365 = vmatprep.subr.mxu0 0.0
      %1366 = vmatpush1.msra.mxu0 0.0
      %1367 = vmatprep.subr.mxu0 0.0
      %1368 = vmatpush1.msra.mxu0 0.0
      %1369 = vmatprep.subr.mxu0 0.0
      %1370 = vmatpush1.msra.mxu0 0.0
      %1371 = vmatprep.subr.mxu0 0.0
      %1372 = vmatpush1.msra.mxu0 0.0
      %1373 = vmatprep.subr.mxu0 0.0
      %1374 = vmatpush1.msra.mxu0 0.0
      %1375 = vmatprep.subr.mxu0 0.0
      %1376 = vmatpush1.msra.mxu0 0.0
      %1377 = vmatprep.subr.mxu0 0.0
      %1378 = vmatpush1.msra.mxu0 0.0
      %1379 = vmatprep.subr.mxu0 0.0
      %1380 = vmatpush1.msra.mxu0 0.0
      %1381 = vmatprep.subr.mxu0 0.0
      %1382 = vmatpush1.msra.mxu0 0.0
      %1383 = vmatprep.subr.mxu0 0.0
      %1384 = vmatpush1.msra.mxu0 0.0
      %1385 = vmatprep.subr.mxu0 0.0
      %1386 = vmatpush1.msra.mxu0 0.0
      %1387 = vmatprep.subr.mxu0 0.0
      %1388 = vmatpush1.msra.mxu0 0.0
      %1389 = vmatprep.subr.mxu0 0.0
      %1390 = vmatpush1.msra.mxu0 0.0
      %1391 = vmatprep.subr.mxu0 0.0
      %1392 = vmatpush1.msra.mxu0 0.0
      %1393 = vmatprep.subr.mxu0 0.0
      %1394 = vmatpush1.msra.mxu0 0.0
      %1395 = vmatprep.subr.mxu0 0.0
      %1396 = vmatpush1.msra.mxu0 0.0
      %1397 = vmatprep.subr.mxu0 0.0
      %1398 = vmatpush1.msra.mxu0 0.0
      %1399 = vmatprep.subr.mxu0 0.0
      %1400 = vmatpush1.msra.mxu0 0.0
      %1401 = vmatprep.subr.mxu0 0.0
      %1402 = vmatpush1.msra.mxu0 0.0
      %1403 = vmatprep.subr.mxu0 0.0
      %1404 = vmatpush1.msra.mxu0 0.0
      %1405 = vmatprep.subr.mxu0 0.0
      %1406 = vmatpush1.msra.mxu0 0.0
      %1407 = vmatprep.subr.mxu0 0.0
      %1408 = vmatpush1.msra.mxu0 0.0
      %1409 = vmatprep.subr.mxu0 0.0
      %1410 = vmatpush1.msra.mxu0 0.0
      %1411 = vmatprep.subr.mxu0 0.0
      %1412 = vmatpush1.msra.mxu0 0.0
      %1413 = vmatprep.subr.mxu0 0.0
      %1414 = vmatpush1.msra.mxu0 0.0
      %1415 = vmatprep.subr.mxu0 0.0
      %1416 = vmatpush1.msra.mxu0 0.0
      %1417 = vmatprep.subr.mxu0 0.0
      %1418 = vmatpush1.msra.mxu0 0.0
      %1419 = vmatprep.subr.mxu0 0.0
      %1420 = vmatpush1.msra.mxu0 0.0
      %1421 = vmatprep.subr.mxu0 0.0
      %1422 = vmatpush1.msra.mxu0 0.0
      %1423 = vmatprep.mubr.f32.mxu0 0.0
      %1424 = vmatmul.mubr.f32.gmra.mrb[0].mxu0 %v1357
      %v1425 = vpop.f32.mrb[0].mxu0
      %v1426 = vadd.f32 %v1353, %v1425
      %v1427 = vpop.f32.mrb[0].mxu0
      %1428 = vdwg.mxu0
      %v1429 = vmul.f32 %v1426, %v1426
      %v1430 = vld [vmem:[%s9] sm:$0xff]
      %v1431 = vld [vmem:[%s9 + $0x8] sm:$0xff]
      %v1432 = vld [vmem:[%s9 + $0x10] sm:$0xff]
      %v1433 = vld [vmem:[%s9 + $0x18] sm:$0xff]
      %v1434 = vld [vmem:[%s9 + $0x20] sm:$0xff]
      %v1435 = vld [vmem:[%s9 + $0x28] sm:$0xff]
      %v1436 = vld [vmem:[%s9 + $0x30] sm:$0xff]
      %v1437 = vld [vmem:[%s9 + $0x38] sm:$0xff]
      %vm1438 = vcmask 523264
      %v1440 = vsel %vm1438, %v1429, 0
      %1442 = vmatprep.subr.mxu0 0.0
      %1443 = vmatpush1.msra.mxu0 %v1430
      %1444 = vmatprep.subr.mxu0 0.0
      %1445 = vmatpush1.msra.mxu0 %v1431
      %1446 = vmatprep.subr.mxu0 0.0
      %1447 = vmatpush1.msra.mxu0 %v1432
      %1448 = vmatprep.subr.mxu0 0.0
      %1449 = vmatpush1.msra.mxu0 %v1433
      %1450 = vmatprep.subr.mxu0 0.0
      %1451 = vmatpush1.msra.mxu0 %v1434
      %1452 = vmatprep.subr.mxu0 0.0
      %1453 = vmatpush1.msra.mxu0 %v1435
      %1454 = vmatprep.subr.mxu0 0.0
      %1455 = vmatpush1.msra.mxu0 %v1436
      %1456 = vmatprep.subr.mxu0 0.0
      %1457 = vmatpush1.msra.mxu0 %v1437
      %1458 = vmatprep.subr.mxu0 0.0
      %1459 = vmatpush1.msra.mxu0 0.0
      %1460 = vmatprep.subr.mxu0 0.0
      %1461 = vmatpush1.msra.mxu0 0.0
      %1462 = vmatprep.subr.mxu0 0.0
      %1463 = vmatpush1.msra.mxu0 0.0
      %1464 = vmatprep.subr.mxu0 0.0
      %1465 = vmatpush1.msra.mxu0 0.0
      %1466 = vmatprep.subr.mxu0 0.0
      %1467 = vmatpush1.msra.mxu0 0.0
      %1468 = vmatprep.subr.mxu0 0.0
      %1469 = vmatpush1.msra.mxu0 0.0
      %1470 = vmatprep.subr.mxu0 0.0
      %1471 = vmatpush1.msra.mxu0 0.0
      %1472 = vmatprep.subr.mxu0 0.0
      %1473 = vmatpush1.msra.mxu0 0.0
      %1474 = vmatprep.subr.mxu0 0.0
      %1475 = vmatpush1.msra.mxu0 0.0
      %1476 = vmatprep.subr.mxu0 0.0
      %1477 = vmatpush1.msra.mxu0 0.0
      %1478 = vmatprep.subr.mxu0 0.0
      %1479 = vmatpush1.msra.mxu0 0.0
      %1480 = vmatprep.subr.mxu0 0.0
      %1481 = vmatpush1.msra.mxu0 0.0
      %1482 = vmatprep.subr.mxu0 0.0
      %1483 = vmatpush1.msra.mxu0 0.0
      %1484 = vmatprep.subr.mxu0 0.0
      %1485 = vmatpush1.msra.mxu0 0.0
      %1486 = vmatprep.subr.mxu0 0.0
      %1487 = vmatpush1.msra.mxu0 0.0
      %1488 = vmatprep.subr.mxu0 0.0
      %1489 = vmatpush1.msra.mxu0 0.0
      %1490 = vmatprep.subr.mxu0 0.0
      %1491 = vmatpush1.msra.mxu0 0.0
      %1492 = vmatprep.subr.mxu0 0.0
      %1493 = vmatpush1.msra.mxu0 0.0
      %1494 = vmatprep.subr.mxu0 0.0
      %1495 = vmatpush1.msra.mxu0 0.0
      %1496 = vmatprep.subr.mxu0 0.0
      %1497 = vmatpush1.msra.mxu0 0.0
      %1498 = vmatprep.subr.mxu0 0.0
      %1499 = vmatpush1.msra.mxu0 0.0
      %1500 = vmatprep.subr.mxu0 0.0
      %1501 = vmatpush1.msra.mxu0 0.0
      %1502 = vmatprep.subr.mxu0 0.0
      %1503 = vmatpush1.msra.mxu0 0.0
      %1504 = vmatprep.subr.mxu0 0.0
      %1505 = vmatpush1.msra.mxu0 0.0
      %1506 = vmatprep.mubr.f32.mxu0 0.0
      %1507 = vmatmul.mubr.f32.gmra.mrb[0].mxu0 %v1440
      %v1508 = vpop.f32.mrb[0].mxu0
      %v1509 = vadd.f32 0.0, %v1508
      %v1510 = vpop.f32.mrb[0].mxu0
      %1511 = vdwg.mxu0
      %v1512 = vadd.f32 %v1509, 1.0
      %v1513 = vrcp.pop %v1512
      %v1514 = vmul.f32 %v1509, %v1513
      %v1515 = vmul.f32 %v1426, %v1514
      %v1516 = vadd.f32 %v1509, 1e-09
      %v1517 = vrsqrt.pop %v1516
      %v1518 = vmul.f32 %v1515, %v1517
      %v1519 = vld [vmem:[%s11] sm:$0xff]
      %v1520 = vld [vmem:[%s11 + $0x8] sm:$0xff]
      %v1521 = vld [vmem:[%s11 + $0x10] sm:$0xff]
      %v1522 = vld [vmem:[%s11 + $0x18] sm:$0xff]
      %v1524 = vsel %vm1107, %v1519, 0
      %v1527 = vsel %vm1107, %v1520, 0
      %v1530 = vsel %vm1107, %v1521, 0
      %v1533 = vsel %vm1107, %v1522, 0
      %vm1535 = vcmask 1043456
      %v1537 = vsel %vm1535, %v1518, 0
      %1539 = vmatprep.subr.mxu0 0.0
      %1540 = vmatpush1.msra.mxu0 %v1537
      %1541 = vmatprep.subr.mxu0 0.0
      %1542 = vmatpush1.msra.mxu0 0.0
      %1543 = vmatprep.subr.mxu0 0.0
      %1544 = vmatpush1.msra.mxu0 0.0
      %1545 = vmatprep.subr.mxu0 0.0
      %1546 = vmatpush1.msra.mxu0 0.0
      %1547 = vmatprep.subr.mxu0 0.0
      %1548 = vmatpush1.msra.mxu0 0.0
      %1549 = vmatprep.subr.mxu0 0.0
      %1550 = vmatpush1.msra.mxu0 0.0
      %1551 = vmatprep.subr.mxu0 0.0
      %1552 = vmatpush1.msra.mxu0 0.0
      %1553 = vmatprep.subr.mxu0 0.0
      %1554 = vmatpush1.msra.mxu0 0.0
      %1555 = vmatprep.subr.mxu0 0.0
      %1556 = vmatpush1.msra.mxu0 0.0
      %1557 = vmatprep.subr.mxu0 0.0
      %1558 = vmatpush1.msra.mxu0 0.0
      %1559 = vmatprep.subr.mxu0 0.0
      %1560 = vmatpush1.msra.mxu0 0.0
      %1561 = vmatprep.subr.mxu0 0.0
      %1562 = vmatpush1.msra.mxu0 0.0
      %1563 = vmatprep.subr.mxu0 0.0
      %1564 = vmatpush1.msra.mxu0 0.0
      %1565 = vmatprep.subr.mxu0 0.0
      %1566 = vmatpush1.msra.mxu0 0.0
      %1567 = vmatprep.subr.mxu0 0.0
      %1568 = vmatpush1.msra.mxu0 0.0
      %1569 = vmatprep.subr.mxu0 0.0
      %1570 = vmatpush1.msra.mxu0 0.0
      %1571 = vmatprep.subr.mxu0 0.0
      %1572 = vmatpush1.msra.mxu0 0.0
      %1573 = vmatprep.subr.mxu0 0.0
      %1574 = vmatpush1.msra.mxu0 0.0
      %1575 = vmatprep.subr.mxu0 0.0
      %1576 = vmatpush1.msra.mxu0 0.0
      %1577 = vmatprep.subr.mxu0 0.0
      %1578 = vmatpush1.msra.mxu0 0.0
      %1579 = vmatprep.subr.mxu0 0.0
      %1580 = vmatpush1.msra.mxu0 0.0
      %1581 = vmatprep.subr.mxu0 0.0
      %1582 = vmatpush1.msra.mxu0 0.0
      %1583 = vmatprep.subr.mxu0 0.0
      %1584 = vmatpush1.msra.mxu0 0.0
      %1585 = vmatprep.subr.mxu0 0.0
      %1586 = vmatpush1.msra.mxu0 0.0
      %1587 = vmatprep.subr.mxu0 0.0
      %1588 = vmatpush1.msra.mxu0 0.0
      %1589 = vmatprep.subr.mxu0 0.0
      %1590 = vmatpush1.msra.mxu0 0.0
      %1591 = vmatprep.subr.mxu0 0.0
      %1592 = vmatpush1.msra.mxu0 0.0
      %1593 = vmatprep.subr.mxu0 0.0
      %1594 = vmatpush1.msra.mxu0 0.0
      %1595 = vmatprep.subr.mxu0 0.0
      %1596 = vmatpush1.msra.mxu0 0.0
      %1597 = vmatprep.subr.mxu0 0.0
      %1598 = vmatpush1.msra.mxu0 0.0
      %1599 = vmatprep.subr.mxu0 0.0
      %1600 = vmatpush1.msra.mxu0 0.0
      %1601 = vmatprep.subr.mxu0 0.0
      %1602 = vmatpush1.msra.mxu0 0.0
      %1603 = vmatprep.mubr.f32.mxu0 0.0
      %1604 = vmatmul.mubr.f32.gmra.mrb[0].mxu0 %v1524
      %v1605 = vpop.f32.mrb[0].mxu0
      %v1606 = vadd.f32 0.0, %v1605
      %v1607 = vpop.f32.mrb[0].mxu0
      %1608 = vmatprep.mubr.f32.mxu0 0.0
      %1609 = vmatmul.mubr.f32.gmra.mrb[0].mxu0 %v1527
      %v1610 = vpop.f32.mrb[0].mxu0
      %v1611 = vadd.f32 0.0, %v1610
      %v1612 = vpop.f32.mrb[0].mxu0
      %1613 = vmatprep.mubr.f32.mxu0 0.0
      %1614 = vmatmul.mubr.f32.gmra.mrb[0].mxu0 %v1530
      %v1615 = vpop.f32.mrb[0].mxu0
      %v1616 = vadd.f32 0.0, %v1615
      %v1617 = vpop.f32.mrb[0].mxu0
      %1618 = vmatprep.mubr.f32.mxu0 0.0
      %1619 = vmatmul.mubr.f32.gmra.mrb[0].mxu0 %v1533
      %v1620 = vpop.f32.mrb[0].mxu0
      %v1621 = vadd.f32 0.0, %v1620
      %v1622 = vpop.f32.mrb[0].mxu0
      %1623 = vdwg.mxu0
      %1628 = vrot.lane.b32.xlu0 %v1606, 64
      %v1629 = vpop.permute.xlu0 %1628
      %1630 = vrot.lane.b32.xlu0 %v1611, 64
      %v1631 = vpop.permute.xlu0 %1630
      %1632 = vrot.lane.b32.xlu0 %v1616, 64
      %v1633 = vpop.permute.xlu0 %1632
      %1634 = vrot.lane.b32.xlu0 %v1621, 64
      %v1635 = vpop.permute.xlu0 %1634
      %v1640 = vsel %vm1438, %v1606, %v1629
      %v1641 = vsel %vm1438, %v1611, %v1631
      %v1642 = vsel %vm1438, %v1616, %v1633
      %v1643 = vsel %vm1438, %v1621, %v1635
      %v1644 = vld [vmem:[%s12] sm:$0xff]
      %v1645 = vld [vmem:[%s12 + $0x8] sm:$0xff]
      %v1646 = vld [vmem:[%s12 + $0x10] sm:$0xff]
      %v1647 = vld [vmem:[%s12 + $0x18] sm:$0xff]
      %v1648 = vld [vmem:[%s12 + $0x20] sm:$0xff]
      %v1649 = vld [vmem:[%s12 + $0x28] sm:$0xff]
      %v1650 = vld [vmem:[%s12 + $0x30] sm:$0xff]
      %v1651 = vld [vmem:[%s12 + $0x38] sm:$0xff]
      %v1652 = vmul.f32 %v1640, %v1644
      %v1653 = vmul.f32 %v1640, %v1645
      %v1654 = vmul.f32 %v1641, %v1646
      %v1655 = vmul.f32 %v1641, %v1647
      %v1656 = vmul.f32 %v1642, %v1648
      %v1657 = vmul.f32 %v1642, %v1649
      %v1658 = vmul.f32 %v1643, %v1650
      %v1659 = vmul.f32 %v1643, %v1651
      %v1660 = vld [vmem:[%s8] sm:$0xff]
      %v1661 = vld [vmem:[%s8 + $0x8] sm:$0xff]
      %v1662 = vld [vmem:[%s8 + $0x10] sm:$0xff]
      %v1663 = vld [vmem:[%s8 + $0x18] sm:$0xff]
      %v1664 = vld [vmem:[%s8 + $0x20] sm:$0xff]
      %v1665 = vld [vmem:[%s8 + $0x28] sm:$0xff]
      %v1666 = vld [vmem:[%s8 + $0x30] sm:$0xff]
      %v1667 = vld [vmem:[%s8 + $0x38] sm:$0xff]
      %v1668 = vld [vmem:[%s8 + $0x40] sm:$0xff]
      %v1669 = vld [vmem:[%s8 + $0x48] sm:$0xff]
      %v1670 = vld [vmem:[%s8 + $0x50] sm:$0xff]
      %v1671 = vld [vmem:[%s8 + $0x58] sm:$0xff]
      %v1672 = vld [vmem:[%s8 + $0x60] sm:$0xff]
      %v1673 = vld [vmem:[%s8 + $0x68] sm:$0xff]
      %v1674 = vld [vmem:[%s8 + $0x70] sm:$0xff]
      %v1675 = vld [vmem:[%s8 + $0x78] sm:$0xff]
      %v1676 = vld [vmem:[%s8 + $0x80] sm:$0xff]
      %v1677 = vld [vmem:[%s8 + $0x88] sm:$0xff]
      %v1678 = vld [vmem:[%s8 + $0x90] sm:$0xff]
      %v1679 = vld [vmem:[%s8 + $0x98] sm:$0xff]
      %v1680 = vld [vmem:[%s8 + $0xa0] sm:$0xff]
      %v1681 = vld [vmem:[%s8 + $0xa8] sm:$0xff]
      %v1682 = vld [vmem:[%s8 + $0xb0] sm:$0xff]
      %v1683 = vld [vmem:[%s8 + $0xb8] sm:$0xff]
      %v1684 = vld [vmem:[%s8 + $0xc0] sm:$0xff]
      %v1685 = vld [vmem:[%s8 + $0xc8] sm:$0xff]
      %v1686 = vld [vmem:[%s8 + $0xd0] sm:$0xff]
      %v1687 = vld [vmem:[%s8 + $0xd8] sm:$0xff]
      %v1688 = vld [vmem:[%s8 + $0xe0] sm:$0xff]
      %v1689 = vld [vmem:[%s8 + $0xe8] sm:$0xff]
      %v1690 = vld [vmem:[%s8 + $0xf0] sm:$0xff]
      %v1691 = vld [vmem:[%s8 + $0xf8] sm:$0xff]
      %1692 = vmatprep.subr.mxu0 0.0
      %1693 = vmatpush1.msra.mxu0 %v1660
      %1694 = vmatprep.subr.mxu0 0.0
      %1695 = vmatpush1.msra.mxu0 %v1661
      %1696 = vmatprep.subr.mxu0 0.0
      %1697 = vmatpush1.msra.mxu0 %v1662
      %1698 = vmatprep.subr.mxu0 0.0
      %1699 = vmatpush1.msra.mxu0 %v1663
      %1700 = vmatprep.subr.mxu0 0.0
      %1701 = vmatpush1.msra.mxu0 %v1664
      %1702 = vmatprep.subr.mxu0 0.0
      %1703 = vmatpush1.msra.mxu0 %v1665
      %1704 = vmatprep.subr.mxu0 0.0
      %1705 = vmatpush1.msra.mxu0 %v1666
      %1706 = vmatprep.subr.mxu0 0.0
      %1707 = vmatpush1.msra.mxu0 %v1667
      %1708 = vmatprep.subr.mxu0 0.0
      %1709 = vmatpush1.msra.mxu0 %v1668
      %1710 = vmatprep.subr.mxu0 0.0
      %1711 = vmatpush1.msra.mxu0 %v1669
      %1712 = vmatprep.subr.mxu0 0.0
      %1713 = vmatpush1.msra.mxu0 %v1670
      %1714 = vmatprep.subr.mxu0 0.0
      %1715 = vmatpush1.msra.mxu0 %v1671
      %1716 = vmatprep.subr.mxu0 0.0
      %1717 = vmatpush1.msra.mxu0 %v1672
      %1718 = vmatprep.subr.mxu0 0.0
      %1719 = vmatpush1.msra.mxu0 %v1673
      %1720 = vmatprep.subr.mxu0 0.0
      %1721 = vmatpush1.msra.mxu0 %v1674
      %1722 = vmatprep.subr.mxu0 0.0
      %1723 = vmatpush1.msra.mxu0 %v1675
      %1724 = vmatprep.subr.mxu0 0.0
      %1725 = vmatpush1.msra.mxu0 %v1676
      %1726 = vmatprep.subr.mxu0 0.0
      %1727 = vmatpush1.msra.mxu0 %v1677
      %1728 = vmatprep.subr.mxu0 0.0
      %1729 = vmatpush1.msra.mxu0 %v1678
      %1730 = vmatprep.subr.mxu0 0.0
      %1731 = vmatpush1.msra.mxu0 %v1679
      %1732 = vmatprep.subr.mxu0 0.0
      %1733 = vmatpush1.msra.mxu0 %v1680
      %1734 = vmatprep.subr.mxu0 0.0
      %1735 = vmatpush1.msra.mxu0 %v1681
      %1736 = vmatprep.subr.mxu0 0.0
      %1737 = vmatpush1.msra.mxu0 %v1682
      %1738 = vmatprep.subr.mxu0 0.0
      %1739 = vmatpush1.msra.mxu0 %v1683
      %1740 = vmatprep.subr.mxu0 0.0
      %1741 = vmatpush1.msra.mxu0 %v1684
      %1742 = vmatprep.subr.mxu0 0.0
      %1743 = vmatpush1.msra.mxu0 %v1685
      %1744 = vmatprep.subr.mxu0 0.0
      %1745 = vmatpush1.msra.mxu0 %v1686
      %1746 = vmatprep.subr.mxu0 0.0
      %1747 = vmatpush1.msra.mxu0 %v1687
      %1748 = vmatprep.subr.mxu0 0.0
      %1749 = vmatpush1.msra.mxu0 %v1688
      %1750 = vmatprep.subr.mxu0 0.0
      %1751 = vmatpush1.msra.mxu0 %v1689
      %1752 = vmatprep.subr.mxu0 0.0
      %1753 = vmatpush1.msra.mxu0 %v1690
      %1754 = vmatprep.subr.mxu0 0.0
      %1755 = vmatpush1.msra.mxu0 %v1691
      %1756 = vmatprep.mubr.f32.mxu0 %v1653
      %1757 = vmatmul.mubr.f32.gmra.mrb[0].mxu0 %v1652
      %v1758 = vpop.f32.mrb[0].mxu0
      %v1759 = vadd.f32 0.0, %v1758
      %v1760 = vpop.f32.mrb[0].mxu0
      %1761 = vmatprep.mubr.f32.mxu0 %v1655
      %1762 = vmatmul.mubr.f32.gmra.mrb[0].mxu0 %v1654
      %v1763 = vpop.f32.mrb[0].mxu0
      %v1764 = vadd.f32 0.0, %v1763
      %v1765 = vpop.f32.mrb[0].mxu0
      %1766 = vmatprep.mubr.f32.mxu0 %v1657
      %1767 = vmatmul.mubr.f32.gmra.mrb[0].mxu0 %v1656
      %v1768 = vpop.f32.mrb[0].mxu0
      %v1769 = vadd.f32 0.0, %v1768
      %v1770 = vpop.f32.mrb[0].mxu0
      %1771 = vmatprep.mubr.f32.mxu0 %v1659
      %1772 = vmatmul.mubr.f32.gmra.mrb[0].mxu0 %v1658
      %v1773 = vpop.f32.mrb[0].mxu0
      %v1774 = vadd.f32 0.0, %v1773
      %v1775 = vpop.f32.mrb[0].mxu0
      %1776 = vdwg.mxu0
      %v1777 = vld [vmem:[%s13] sm:$0x7]
      %v1778 = vld [vmem:[%s14] sm:$0xff]
      %v1779 = vld [vmem:[%s14 + $0x8] sm:$0xff]
      %v1780 = vld [vmem:[%s14 + $0x10] sm:$0xff]
      %v1781 = vld [vmem:[%s15] sm:$0xff]
      %v1782 = vld [vmem:[%s15 + $0x8] sm:$0xff]
      %v1783 = vld [vmem:[%s15 + $0x10] sm:$0xff]
      %v1784 = vsel %vm1355, %v1759, 0.0
      %v1785 = vsel %vm1355, %v1764, 0.0
      %v1786 = vadd.f32 %v1784, %v1785
      %v1787 = vsel %vm1355, %v1769, 0.0
      %v1788 = vadd.f32 %v1786, %v1787
      %v1789 = vsel %vm1355, %v1774, 0.0
      %v1790 = vadd.f32 %v1788, %v1789
      %v1791 = vrot.slane %v1790, 4
      %v1792 = vadd.f32 %v1790, %v1791
      %v1793 = vrot.slane %v1792, 2
      %v1794 = vadd.f32 %v1792, %v1793
      %v1795 = vrot.slane %v1794, 1
      %v1796 = vadd.f32 %v1794, %v1795
      %v1797 = vmul.f32 %v1796, 0.33333334
      %v1798 = vmul.f32 %v1797, %v1797
      %v1800 = vsel %vm1355, %v1798, 0
      %1802 = vmatprep.subr.mxu0 0.0
      %1803 = vmatpush1.msra.mxu0 %v1781
      %1804 = vmatprep.subr.mxu0 0.0
      %1805 = vmatpush1.msra.mxu0 %v1782
      %1806 = vmatprep.subr.mxu0 0.0
      %1807 = vmatpush1.msra.mxu0 %v1783
      %1808 = vmatprep.subr.mxu0 0.0
      %1809 = vmatpush1.msra.mxu0 0.0
      %1810 = vmatprep.subr.mxu0 0.0
      %1811 = vmatpush1.msra.mxu0 0.0
      %1812 = vmatprep.subr.mxu0 0.0
      %1813 = vmatpush1.msra.mxu0 0.0
      %1814 = vmatprep.subr.mxu0 0.0
      %1815 = vmatpush1.msra.mxu0 0.0
      %1816 = vmatprep.subr.mxu0 0.0
      %1817 = vmatpush1.msra.mxu0 0.0
      %1818 = vmatprep.subr.mxu0 0.0
      %1819 = vmatpush1.msra.mxu0 0.0
      %1820 = vmatprep.subr.mxu0 0.0
      %1821 = vmatpush1.msra.mxu0 0.0
      %1822 = vmatprep.subr.mxu0 0.0
      %1823 = vmatpush1.msra.mxu0 0.0
      %1824 = vmatprep.subr.mxu0 0.0
      %1825 = vmatpush1.msra.mxu0 0.0
      %1826 = vmatprep.subr.mxu0 0.0
      %1827 = vmatpush1.msra.mxu0 0.0
      %1828 = vmatprep.subr.mxu0 0.0
      %1829 = vmatpush1.msra.mxu0 0.0
      %1830 = vmatprep.subr.mxu0 0.0
      %1831 = vmatpush1.msra.mxu0 0.0
      %1832 = vmatprep.subr.mxu0 0.0
      %1833 = vmatpush1.msra.mxu0 0.0
      %1834 = vmatprep.subr.mxu0 0.0
      %1835 = vmatpush1.msra.mxu0 0.0
      %1836 = vmatprep.subr.mxu0 0.0
      %1837 = vmatpush1.msra.mxu0 0.0
      %1838 = vmatprep.subr.mxu0 0.0
      %1839 = vmatpush1.msra.mxu0 0.0
      %1840 = vmatprep.subr.mxu0 0.0
      %1841 = vmatpush1.msra.mxu0 0.0
      %1842 = vmatprep.subr.mxu0 0.0
      %1843 = vmatpush1.msra.mxu0 0.0
      %1844 = vmatprep.subr.mxu0 0.0
      %1845 = vmatpush1.msra.mxu0 0.0
      %1846 = vmatprep.subr.mxu0 0.0
      %1847 = vmatpush1.msra.mxu0 0.0
      %1848 = vmatprep.subr.mxu0 0.0
      %1849 = vmatpush1.msra.mxu0 0.0
      %1850 = vmatprep.subr.mxu0 0.0
      %1851 = vmatpush1.msra.mxu0 0.0
      %1852 = vmatprep.subr.mxu0 0.0
      %1853 = vmatpush1.msra.mxu0 0.0
      %1854 = vmatprep.subr.mxu0 0.0
      %1855 = vmatpush1.msra.mxu0 0.0
      %1856 = vmatprep.subr.mxu0 0.0
      %1857 = vmatpush1.msra.mxu0 0.0
      %1858 = vmatprep.subr.mxu0 0.0
      %1859 = vmatpush1.msra.mxu0 0.0
      %1860 = vmatprep.subr.mxu0 0.0
      %1861 = vmatpush1.msra.mxu0 0.0
      %1862 = vmatprep.subr.mxu0 0.0
      %1863 = vmatpush1.msra.mxu0 0.0
      %1864 = vmatprep.subr.mxu0 0.0
      %1865 = vmatpush1.msra.mxu0 0.0
      %1866 = vmatprep.mubr.f32.mxu0 0.0
      %1867 = vmatmul.mubr.f32.gmra.mrb[0].mxu0 %v1800
      %v1868 = vpop.f32.mrb[0].mxu0
      %v1869 = vadd.f32 0.0, %v1868
      %v1870 = vpop.f32.mrb[0].mxu0
      %1871 = vdwg.mxu0
      %v1872 = vadd.f32 %v1869, 1.0
      %v1873 = vrcp.pop %v1872
      %v1874 = vmul.f32 %v1869, %v1873
      %v1875 = vmul.f32 %v1797, %v1874
      %v1876 = vadd.f32 %v1869, 1e-09
      %v1877 = vrsqrt.pop %v1876
      %v1878 = vmul.f32 %v1875, %v1877
      %v1879 = vlaneseq
      %v1880 = vshrl.u32 %v1879, 7
      %v1881 = vsub.s32 0, %v1880
      %v1882 = vrot.slane %v1878, %v1881
      %v1883 = vmul.f32 %v1759, %v1882
      %v1884 = vmul.f32 %v1764, %v1882
      %v1885 = vmul.f32 %v1769, %v1882
      %v1886 = vmul.f32 %v1774, %v1882
      %v1888 = vsel %vm1355, %v1883, 0
      %v1891 = vsel %vm1355, %v1884, 0
      %v1894 = vsel %vm1355, %v1885, 0
      %v1897 = vsel %vm1355, %v1886, 0
      %1899 = vmatprep.subr.mxu0 0.0
      %1900 = vmatpush1.msra.mxu0 %v1778
      %1901 = vmatprep.subr.mxu0 0.0
      %1902 = vmatpush1.msra.mxu0 %v1779
      %1903 = vmatprep.subr.mxu0 0.0
      %1904 = vmatpush1.msra.mxu0 %v1780
      %1905 = vmatprep.subr.mxu0 0.0
      %1906 = vmatpush1.msra.mxu0 0.0
      %1907 = vmatprep.subr.mxu0 0.0
      %1908 = vmatpush1.msra.mxu0 0.0
      %1909 = vmatprep.subr.mxu0 0.0
      %1910 = vmatpush1.msra.mxu0 0.0
      %1911 = vmatprep.subr.mxu0 0.0
      %1912 = vmatpush1.msra.mxu0 0.0
      %1913 = vmatprep.subr.mxu0 0.0
      %1914 = vmatpush1.msra.mxu0 0.0
      %1915 = vmatprep.subr.mxu0 0.0
      %1916 = vmatpush1.msra.mxu0 0.0
      %1917 = vmatprep.subr.mxu0 0.0
      %1918 = vmatpush1.msra.mxu0 0.0
      %1919 = vmatprep.subr.mxu0 0.0
      %1920 = vmatpush1.msra.mxu0 0.0
      %1921 = vmatprep.subr.mxu0 0.0
      %1922 = vmatpush1.msra.mxu0 0.0
      %1923 = vmatprep.subr.mxu0 0.0
      %1924 = vmatpush1.msra.mxu0 0.0
      %1925 = vmatprep.subr.mxu0 0.0
      %1926 = vmatpush1.msra.mxu0 0.0
      %1927 = vmatprep.subr.mxu0 0.0
      %1928 = vmatpush1.msra.mxu0 0.0
      %1929 = vmatprep.subr.mxu0 0.0
      %1930 = vmatpush1.msra.mxu0 0.0
      %1931 = vmatprep.subr.mxu0 0.0
      %1932 = vmatpush1.msra.mxu0 0.0
      %1933 = vmatprep.subr.mxu0 0.0
      %1934 = vmatpush1.msra.mxu0 0.0
      %1935 = vmatprep.subr.mxu0 0.0
      %1936 = vmatpush1.msra.mxu0 0.0
      %1937 = vmatprep.subr.mxu0 0.0
      %1938 = vmatpush1.msra.mxu0 0.0
      %1939 = vmatprep.subr.mxu0 0.0
      %1940 = vmatpush1.msra.mxu0 0.0
      %1941 = vmatprep.subr.mxu0 0.0
      %1942 = vmatpush1.msra.mxu0 0.0
      %1943 = vmatprep.subr.mxu0 0.0
      %1944 = vmatpush1.msra.mxu0 0.0
      %1945 = vmatprep.subr.mxu0 0.0
      %1946 = vmatpush1.msra.mxu0 0.0
      %1947 = vmatprep.subr.mxu0 0.0
      %1948 = vmatpush1.msra.mxu0 0.0
      %1949 = vmatprep.subr.mxu0 0.0
      %1950 = vmatpush1.msra.mxu0 0.0
      %1951 = vmatprep.subr.mxu0 0.0
      %1952 = vmatpush1.msra.mxu0 0.0
      %1953 = vmatprep.subr.mxu0 0.0
      %1954 = vmatpush1.msra.mxu0 0.0
      %1955 = vmatprep.subr.mxu0 0.0
      %1956 = vmatpush1.msra.mxu0 0.0
      %1957 = vmatprep.subr.mxu0 0.0
      %1958 = vmatpush1.msra.mxu0 0.0
      %1959 = vmatprep.subr.mxu0 0.0
      %1960 = vmatpush1.msra.mxu0 0.0
      %1961 = vmatprep.subr.mxu0 0.0
      %1962 = vmatpush1.msra.mxu0 0.0
      %1963 = vmatprep.mubr.f32.mxu0 0.0
      %1964 = vmatmul.mubr.f32.gmra.mrb[0].mxu0 %v1888
      %v1965 = vpop.f32.mrb[0].mxu0
      %v1966 = vadd.f32 0.0, %v1965
      %v1967 = vpop.f32.mrb[0].mxu0
      %1968 = vmatprep.mubr.f32.mxu0 0.0
      %1969 = vmatmul.mubr.f32.gmra.mrb[0].mxu0 %v1891
      %v1970 = vpop.f32.mrb[0].mxu0
      %v1971 = vadd.f32 0.0, %v1970
      %v1972 = vpop.f32.mrb[0].mxu0
      %1973 = vmatprep.mubr.f32.mxu0 0.0
      %1974 = vmatmul.mubr.f32.gmra.mrb[0].mxu0 %v1894
      %v1975 = vpop.f32.mrb[0].mxu0
      %v1976 = vadd.f32 0.0, %v1975
      %v1977 = vpop.f32.mrb[0].mxu0
      %1978 = vmatprep.mubr.f32.mxu0 0.0
      %1979 = vmatmul.mubr.f32.gmra.mrb[0].mxu0 %v1897
      %v1980 = vpop.f32.mrb[0].mxu0
      %v1981 = vadd.f32 0.0, %v1980
      %v1982 = vpop.f32.mrb[0].mxu0
      %1983 = vdwg.mxu0
      %vm1984 = vcmask 23552
      %v1985 = vsel %vm1984, %v1966, -inf
      %1986 = vmax.xlane.f32.xlu0 %v1985
      %v1987 = vpop.xlane.xlu0 %1986
      %v1988 = vsel %vm1984, %v1971, -inf
      %1989 = vmax.xlane.f32.xlu0 %v1988
      %v1990 = vpop.xlane.xlu0 %1989
      %v1991 = vsel %vm1984, %v1976, -inf
      %1992 = vmax.xlane.f32.xlu0 %v1991
      %v1993 = vpop.xlane.xlu0 %1992
      %v1994 = vsel %vm1984, %v1981, -inf
      %1995 = vmax.xlane.f32.xlu0 %v1994
      %v1996 = vpop.xlane.xlu0 %1995
      %v1997 = vsub.f32 %v1966, %v1987
      %v1998 = vsub.f32 %v1971, %v1990
      %v1999 = vsub.f32 %v1976, %v1993
      %v2000 = vsub.f32 %v1981, %v1996
      %v2001 = vmul.f32 %v1997, 1.442695
      %v2002 = vpow.pop %v2001
      %v2003 = vmul.f32 %v1998, 1.442695
      %v2004 = vpow.pop %v2003
      %v2005 = vmul.f32 %v1999, 1.442695
      %v2006 = vpow.pop %v2005
      %v2007 = vmul.f32 %v2000, 1.442695
      %v2008 = vpow.pop %v2007
      %v2009 = vsel %vm1984, %v2002, 0.0
      %2010 = vadd.xlane.f32.xlu0 %v2009
      %v2011 = vpop.xlane.xlu0 %2010
      %v2012 = vsel %vm1984, %v2004, 0.0
      %2013 = vadd.xlane.f32.xlu0 %v2012
      %v2014 = vpop.xlane.xlu0 %2013
      %v2015 = vsel %vm1984, %v2006, 0.0
      %2016 = vadd.xlane.f32.xlu0 %v2015
      %v2017 = vpop.xlane.xlu0 %2016
      %v2018 = vsel %vm1984, %v2008, 0.0
      %2019 = vadd.xlane.f32.xlu0 %v2018
      %v2020 = vpop.xlane.xlu0 %2019
      %v2021 = vrcp.pop %v2011
      %v2022 = vrcp.pop %v2014
      %v2023 = vrcp.pop %v2017
      %v2024 = vrcp.pop %v2020
      %v2025 = vmul.f32 %v2002, %v2021
      %v2026 = vmul.f32 %v2004, %v2022
      %v2027 = vmul.f32 %v2006, %v2023
      %v2028 = vmul.f32 %v2008, %v2024
      %v2030 = vsel %vm1984, %v2025, 0
      %v2033 = vsel %vm1984, %v2026, 0
      %v2036 = vsel %vm1984, %v2027, 0
      %v2039 = vsel %vm1984, %v2028, 0
      %vm2041 = vcmask 1042432
      %v2043 = vsel %vm2041, %v1777, 0
      %2045 = vmatprep.subr.mxu0 0.0
      %2046 = vmatpush1.msra.mxu0 %v2043
      %2047 = vmatprep.subr.mxu0 0.0
      %2048 = vmatpush1.msra.mxu0 0.0
      %2049 = vmatprep.subr.mxu0 0.0
      %2050 = vmatpush1.msra.mxu0 0.0
      %2051 = vmatprep.subr.mxu0 0.0
      %2052 = vmatpush1.msra.mxu0 0.0
      %2053 = vmatprep.subr.mxu0 0.0
      %2054 = vmatpush1.msra.mxu0 0.0
      %2055 = vmatprep.subr.mxu0 0.0
      %2056 = vmatpush1.msra.mxu0 0.0
      %2057 = vmatprep.subr.mxu0 0.0
      %2058 = vmatpush1.msra.mxu0 0.0
      %2059 = vmatprep.subr.mxu0 0.0
      %2060 = vmatpush1.msra.mxu0 0.0
      %2061 = vmatprep.subr.mxu0 0.0
      %2062 = vmatpush1.msra.mxu0 0.0
      %2063 = vmatprep.subr.mxu0 0.0
      %2064 = vmatpush1.msra.mxu0 0.0
      %2065 = vmatprep.subr.mxu0 0.0
      %2066 = vmatpush1.msra.mxu0 0.0
      %2067 = vmatprep.subr.mxu0 0.0
      %2068 = vmatpush1.msra.mxu0 0.0
      %2069 = vmatprep.subr.mxu0 0.0
      %2070 = vmatpush1.msra.mxu0 0.0
      %2071 = vmatprep.subr.mxu0 0.0
      %2072 = vmatpush1.msra.mxu0 0.0
      %2073 = vmatprep.subr.mxu0 0.0
      %2074 = vmatpush1.msra.mxu0 0.0
      %2075 = vmatprep.subr.mxu0 0.0
      %2076 = vmatpush1.msra.mxu0 0.0
      %2077 = vmatprep.subr.mxu0 0.0
      %2078 = vmatpush1.msra.mxu0 0.0
      %2079 = vmatprep.subr.mxu0 0.0
      %2080 = vmatpush1.msra.mxu0 0.0
      %2081 = vmatprep.subr.mxu0 0.0
      %2082 = vmatpush1.msra.mxu0 0.0
      %2083 = vmatprep.subr.mxu0 0.0
      %2084 = vmatpush1.msra.mxu0 0.0
      %2085 = vmatprep.subr.mxu0 0.0
      %2086 = vmatpush1.msra.mxu0 0.0
      %2087 = vmatprep.subr.mxu0 0.0
      %2088 = vmatpush1.msra.mxu0 0.0
      %2089 = vmatprep.subr.mxu0 0.0
      %2090 = vmatpush1.msra.mxu0 0.0
      %2091 = vmatprep.subr.mxu0 0.0
      %2092 = vmatpush1.msra.mxu0 0.0
      %2093 = vmatprep.subr.mxu0 0.0
      %2094 = vmatpush1.msra.mxu0 0.0
      %2095 = vmatprep.subr.mxu0 0.0
      %2096 = vmatpush1.msra.mxu0 0.0
      %2097 = vmatprep.subr.mxu0 0.0
      %2098 = vmatpush1.msra.mxu0 0.0
      %2099 = vmatprep.subr.mxu0 0.0
      %2100 = vmatpush1.msra.mxu0 0.0
      %2101 = vmatprep.subr.mxu0 0.0
      %2102 = vmatpush1.msra.mxu0 0.0
      %2103 = vmatprep.subr.mxu0 0.0
      %2104 = vmatpush1.msra.mxu0 0.0
      %2105 = vmatprep.subr.mxu0 0.0
      %2106 = vmatpush1.msra.mxu0 0.0
      %2107 = vmatprep.subr.mxu0 0.0
      %2108 = vmatpush1.msra.mxu0 0.0
      %2109 = vmatprep.mubr.f32.mxu0 0.0
      %2110 = vmatmul.mubr.f32.gmra.mrb[0].mxu0 %v2030
      %v2111 = vpop.f32.mrb[0].mxu0
      %v2112 = vadd.f32 0.0, %v2111
      %v2113 = vpop.f32.mrb[0].mxu0
      %2114 = vmatprep.mubr.f32.mxu0 0.0
      %2115 = vmatmul.mubr.f32.gmra.mrb[0].mxu0 %v2033
      %v2116 = vpop.f32.mrb[0].mxu0
      %v2117 = vadd.f32 0.0, %v2116
      %v2118 = vpop.f32.mrb[0].mxu0
      %2119 = vmatprep.mubr.f32.mxu0 0.0
      %2120 = vmatmul.mubr.f32.gmra.mrb[0].mxu0 %v2036
      %v2121 = vpop.f32.mrb[0].mxu0
      %v2122 = vadd.f32 0.0, %v2121
      %v2123 = vpop.f32.mrb[0].mxu0
      %2124 = vmatprep.mubr.f32.mxu0 0.0
      %2125 = vmatmul.mubr.f32.gmra.mrb[0].mxu0 %v2039
      %v2126 = vpop.f32.mrb[0].mxu0
      %v2127 = vadd.f32 0.0, %v2126
      %v2128 = vpop.f32.mrb[0].mxu0
      %2129 = vdwg.mxu0
      %v2130 = vmul.f32 %v2112, %v1759
      %v2131 = vmul.f32 %v2117, %v1764
      %v2132 = vmul.f32 %v2122, %v1769
      %v2133 = vmul.f32 %v2127, %v1774
      %v2134 = vsel %vm1355, %v2130, 0.0
      %v2135 = vsel %vm1355, %v2131, 0.0
      %v2136 = vadd.f32 %v2134, %v2135
      %v2137 = vsel %vm1355, %v2132, 0.0
      %v2138 = vadd.f32 %v2136, %v2137
      %v2139 = vsel %vm1355, %v2133, 0.0
      %v2140 = vadd.f32 %v2138, %v2139
      %v2141 = vrot.slane %v2140, 4
      %v2142 = vadd.f32 %v2140, %v2141
      %v2143 = vrot.slane %v2142, 2
      %v2144 = vadd.f32 %v2142, %v2143
      %v2145 = vrot.slane %v2144, 1
      %v2146 = vadd.f32 %v2144, %v2145
      %v2147 = vmul.f32 %v2146, %v2146
      %v2149 = vsel %vm1355, %v2147, 0
      %2151 = vmatprep.subr.mxu0 0.0
      %2152 = vmatpush1.msra.mxu0 %v1781
      %2153 = vmatprep.subr.mxu0 0.0
      %2154 = vmatpush1.msra.mxu0 %v1782
      %2155 = vmatprep.subr.mxu0 0.0
      %2156 = vmatpush1.msra.mxu0 %v1783
      %2157 = vmatprep.subr.mxu0 0.0
      %2158 = vmatpush1.msra.mxu0 0.0
      %2159 = vmatprep.subr.mxu0 0.0
      %2160 = vmatpush1.msra.mxu0 0.0
      %2161 = vmatprep.subr.mxu0 0.0
      %2162 = vmatpush1.msra.mxu0 0.0
      %2163 = vmatprep.subr.mxu0 0.0
      %2164 = vmatpush1.msra.mxu0 0.0
      %2165 = vmatprep.subr.mxu0 0.0
      %2166 = vmatpush1.msra.mxu0 0.0
      %2167 = vmatprep.subr.mxu0 0.0
      %2168 = vmatpush1.msra.mxu0 0.0
      %2169 = vmatprep.subr.mxu0 0.0
      %2170 = vmatpush1.msra.mxu0 0.0
      %2171 = vmatprep.subr.mxu0 0.0
      %2172 = vmatpush1.msra.mxu0 0.0
      %2173 = vmatprep.subr.mxu0 0.0
      %2174 = vmatpush1.msra.mxu0 0.0
      %2175 = vmatprep.subr.mxu0 0.0
      %2176 = vmatpush1.msra.mxu0 0.0
      %2177 = vmatprep.subr.mxu0 0.0
      %2178 = vmatpush1.msra.mxu0 0.0
      %2179 = vmatprep.subr.mxu0 0.0
      %2180 = vmatpush1.msra.mxu0 0.0
      %2181 = vmatprep.subr.mxu0 0.0
      %2182 = vmatpush1.msra.mxu0 0.0
      %2183 = vmatprep.subr.mxu0 0.0
      %2184 = vmatpush1.msra.mxu0 0.0
      %2185 = vmatprep.subr.mxu0 0.0
      %2186 = vmatpush1.msra.mxu0 0.0
      %2187 = vmatprep.subr.mxu0 0.0
      %2188 = vmatpush1.msra.mxu0 0.0
      %2189 = vmatprep.subr.mxu0 0.0
      %2190 = vmatpush1.msra.mxu0 0.0
      %2191 = vmatprep.subr.mxu0 0.0
      %2192 = vmatpush1.msra.mxu0 0.0
      %2193 = vmatprep.subr.mxu0 0.0
      %2194 = vmatpush1.msra.mxu0 0.0
      %2195 = vmatprep.subr.mxu0 0.0
      %2196 = vmatpush1.msra.mxu0 0.0
      %2197 = vmatprep.subr.mxu0 0.0
      %2198 = vmatpush1.msra.mxu0 0.0
      %2199 = vmatprep.subr.mxu0 0.0
      %2200 = vmatpush1.msra.mxu0 0.0
      %2201 = vmatprep.subr.mxu0 0.0
      %2202 = vmatpush1.msra.mxu0 0.0
      %2203 = vmatprep.subr.mxu0 0.0
      %2204 = vmatpush1.msra.mxu0 0.0
      %2205 = vmatprep.subr.mxu0 0.0
      %2206 = vmatpush1.msra.mxu0 0.0
      %2207 = vmatprep.subr.mxu0 0.0
      %2208 = vmatpush1.msra.mxu0 0.0
      %2209 = vmatprep.subr.mxu0 0.0
      %2210 = vmatpush1.msra.mxu0 0.0
      %2211 = vmatprep.subr.mxu0 0.0
      %2212 = vmatpush1.msra.mxu0 0.0
      %2213 = vmatprep.subr.mxu0 0.0
      %2214 = vmatpush1.msra.mxu0 0.0
      %2215 = vmatprep.mubr.f32.mxu0 0.0
      %2216 = vmatmul.mubr.f32.gmra.mrb[0].mxu0 %v2149
      %v2217 = vpop.f32.mrb[0].mxu0
      %v2218 = vadd.f32 0.0, %v2217
      %v2219 = vpop.f32.mrb[0].mxu0
      %2220 = vdwg.mxu0
      %v2221 = vadd.f32 %v2218, 1.0
      %v2222 = vrcp.pop %v2221
      %v2223 = vmul.f32 %v2218, %v2222
      %v2224 = vmul.f32 %v2146, %v2223
      %v2225 = vadd.f32 %v2218, 1e-09
      %v2226 = vrsqrt.pop %v2225
      %v2227 = vmul.f32 %v2224, %v2226
      %v2228 = vlaneseq
      %v2229 = vshrl.u32 %v2228, 7
      %v2230 = vsub.s32 0, %v2229
      %v2231 = vrot.slane %v2227, %v2230
      %v2232 = vmul.f32 %v1759, %v2231
      %v2233 = vmul.f32 %v1764, %v2231
      %v2234 = vmul.f32 %v1769, %v2231
      %v2235 = vmul.f32 %v1774, %v2231
      %v2237 = vsel %vm1355, %v2232, 0
      %v2240 = vsel %vm1355, %v2233, 0
      %v2243 = vsel %vm1355, %v2234, 0
      %v2246 = vsel %vm1355, %v2235, 0
      %2248 = vmatprep.subr.mxu0 0.0
      %2249 = vmatpush1.msra.mxu0 %v1778
      %2250 = vmatprep.subr.mxu0 0.0
      %2251 = vmatpush1.msra.mxu0 %v1779
      %2252 = vmatprep.subr.mxu0 0.0
      %2253 = vmatpush1.msra.mxu0 %v1780
      %2254 = vmatprep.subr.mxu0 0.0
      %2255 = vmatpush1.msra.mxu0 0.0
      %2256 = vmatprep.subr.mxu0 0.0
      %2257 = vmatpush1.msra.mxu0 0.0
      %2258 = vmatprep.subr.mxu0 0.0
      %2259 = vmatpush1.msra.mxu0 0.0
      %2260 = vmatprep.subr.mxu0 0.0
      %2261 = vmatpush1.msra.mxu0 0.0
      %2262 = vmatprep.subr.mxu0 0.0
      %2263 = vmatpush1.msra.mxu0 0.0
      %2264 = vmatprep.subr.mxu0 0.0
      %2265 = vmatpush1.msra.mxu0 0.0
      %2266 = vmatprep.subr.mxu0 0.0
      %2267 = vmatpush1.msra.mxu0 0.0
      %2268 = vmatprep.subr.mxu0 0.0
      %2269 = vmatpush1.msra.mxu0 0.0
      %2270 = vmatprep.subr.mxu0 0.0
      %2271 = vmatpush1.msra.mxu0 0.0
      %2272 = vmatprep.subr.mxu0 0.0
      %2273 = vmatpush1.msra.mxu0 0.0
      %2274 = vmatprep.subr.mxu0 0.0
      %2275 = vmatpush1.msra.mxu0 0.0
      %2276 = vmatprep.subr.mxu0 0.0
      %2277 = vmatpush1.msra.mxu0 0.0
      %2278 = vmatprep.subr.mxu0 0.0
      %2279 = vmatpush1.msra.mxu0 0.0
      %2280 = vmatprep.subr.mxu0 0.0
      %2281 = vmatpush1.msra.mxu0 0.0
      %2282 = vmatprep.subr.mxu0 0.0
      %2283 = vmatpush1.msra.mxu0 0.0
      %2284 = vmatprep.subr.mxu0 0.0
      %2285 = vmatpush1.msra.mxu0 0.0
      %2286 = vmatprep.subr.mxu0 0.0
      %2287 = vmatpush1.msra.mxu0 0.0
      %2288 = vmatprep.subr.mxu0 0.0
      %2289 = vmatpush1.msra.mxu0 0.0
      %2290 = vmatprep.subr.mxu0 0.0
      %2291 = vmatpush1.msra.mxu0 0.0
      %2292 = vmatprep.subr.mxu0 0.0
      %2293 = vmatpush1.msra.mxu0 0.0
      %2294 = vmatprep.subr.mxu0 0.0
      %2295 = vmatpush1.msra.mxu0 0.0
      %2296 = vmatprep.subr.mxu0 0.0
      %2297 = vmatpush1.msra.mxu0 0.0
      %2298 = vmatprep.subr.mxu0 0.0
      %2299 = vmatpush1.msra.mxu0 0.0
      %2300 = vmatprep.subr.mxu0 0.0
      %2301 = vmatpush1.msra.mxu0 0.0
      %2302 = vmatprep.subr.mxu0 0.0
      %2303 = vmatpush1.msra.mxu0 0.0
      %2304 = vmatprep.subr.mxu0 0.0
      %2305 = vmatpush1.msra.mxu0 0.0
      %2306 = vmatprep.subr.mxu0 0.0
      %2307 = vmatpush1.msra.mxu0 0.0
      %2308 = vmatprep.subr.mxu0 0.0
      %2309 = vmatpush1.msra.mxu0 0.0
      %2310 = vmatprep.subr.mxu0 0.0
      %2311 = vmatpush1.msra.mxu0 0.0
      %2312 = vmatprep.mubr.f32.mxu0 0.0
      %2313 = vmatmul.mubr.f32.gmra.mrb[0].mxu0 %v2237
      %v2314 = vpop.f32.mrb[0].mxu0
      %v2315 = vadd.f32 0.0, %v2314
      %v2316 = vpop.f32.mrb[0].mxu0
      %2317 = vmatprep.mubr.f32.mxu0 0.0
      %2318 = vmatmul.mubr.f32.gmra.mrb[0].mxu0 %v2240
      %v2319 = vpop.f32.mrb[0].mxu0
      %v2320 = vadd.f32 0.0, %v2319
      %v2321 = vpop.f32.mrb[0].mxu0
      %2322 = vmatprep.mubr.f32.mxu0 0.0
      %2323 = vmatmul.mubr.f32.gmra.mrb[0].mxu0 %v2243
      %v2324 = vpop.f32.mrb[0].mxu0
      %v2325 = vadd.f32 0.0, %v2324
      %v2326 = vpop.f32.mrb[0].mxu0
      %2327 = vmatprep.mubr.f32.mxu0 0.0
      %2328 = vmatmul.mubr.f32.gmra.mrb[0].mxu0 %v2246
      %v2329 = vpop.f32.mrb[0].mxu0
      %v2330 = vadd.f32 0.0, %v2329
      %v2331 = vpop.f32.mrb[0].mxu0
      %2332 = vdwg.mxu0
      %v2333 = vadd.f32 %v1966, %v2315
      %v2334 = vadd.f32 %v1971, %v2320
      %v2335 = vadd.f32 %v1976, %v2325
      %v2336 = vadd.f32 %v1981, %v2330
      %v2337 = vsel %vm1984, %v2333, -inf
      %2338 = vmax.xlane.f32.xlu0 %v2337
      %v2339 = vpop.xlane.xlu0 %2338
      %v2340 = vsel %vm1984, %v2334, -inf
      %2341 = vmax.xlane.f32.xlu0 %v2340
      %v2342 = vpop.xlane.xlu0 %2341
      %v2343 = vsel %vm1984, %v2335, -inf
      %2344 = vmax.xlane.f32.xlu0 %v2343
      %v2345 = vpop.xlane.xlu0 %2344
      %v2346 = vsel %vm1984, %v2336, -inf
      %2347 = vmax.xlane.f32.xlu0 %v2346
      %v2348 = vpop.xlane.xlu0 %2347
      %v2349 = vsub.f32 %v2333, %v2339
      %v2350 = vsub.f32 %v2334, %v2342
      %v2351 = vsub.f32 %v2335, %v2345
      %v2352 = vsub.f32 %v2336, %v2348
      %v2353 = vmul.f32 %v2349, 1.442695
      %v2354 = vpow.pop %v2353
      %v2355 = vmul.f32 %v2350, 1.442695
      %v2356 = vpow.pop %v2355
      %v2357 = vmul.f32 %v2351, 1.442695
      %v2358 = vpow.pop %v2357
      %v2359 = vmul.f32 %v2352, 1.442695
      %v2360 = vpow.pop %v2359
      %v2361 = vsel %vm1984, %v2354, 0.0
      %2362 = vadd.xlane.f32.xlu0 %v2361
      %v2363 = vpop.xlane.xlu0 %2362
      %v2364 = vsel %vm1984, %v2356, 0.0
      %2365 = vadd.xlane.f32.xlu0 %v2364
      %v2366 = vpop.xlane.xlu0 %2365
      %v2367 = vsel %vm1984, %v2358, 0.0
      %2368 = vadd.xlane.f32.xlu0 %v2367
      %v2369 = vpop.xlane.xlu0 %2368
      %v2370 = vsel %vm1984, %v2360, 0.0
      %2371 = vadd.xlane.f32.xlu0 %v2370
      %v2372 = vpop.xlane.xlu0 %2371
      %v2373 = vrcp.pop %v2363
      %v2374 = vrcp.pop %v2366
      %v2375 = vrcp.pop %v2369
      %v2376 = vrcp.pop %v2372
      %v2377 = vmul.f32 %v2354, %v2373
      %v2378 = vmul.f32 %v2356, %v2374
      %v2379 = vmul.f32 %v2358, %v2375
      %v2380 = vmul.f32 %v2360, %v2376
      %v2382 = vsel %vm1984, %v2377, 0
      %v2385 = vsel %vm1984, %v2378, 0
      %v2388 = vsel %vm1984, %v2379, 0
      %v2391 = vsel %vm1984, %v2380, 0
      %2393 = vmatprep.subr.mxu0 0.0
      %2394 = vmatpush1.msra.mxu0 %v2043
      %2395 = vmatprep.subr.mxu0 0.0
      %2396 = vmatpush1.msra.mxu0 0.0
      %2397 = vmatprep.subr.mxu0 0.0
      %2398 = vmatpush1.msra.mxu0 0.0
      %2399 = vmatprep.subr.mxu0 0.0
      %2400 = vmatpush1.msra.mxu0 0.0
      %2401 = vmatprep.subr.mxu0 0.0
      %2402 = vmatpush1.msra.mxu0 0.0
      %2403 = vmatprep.subr.mxu0 0.0
      %2404 = vmatpush1.msra.mxu0 0.0
      %2405 = vmatprep.subr.mxu0 0.0
      %2406 = vmatpush1.msra.mxu0 0.0
      %2407 = vmatprep.subr.mxu0 0.0
      %2408 = vmatpush1.msra.mxu0 0.0
      %2409 = vmatprep.subr.mxu0 0.0
      %2410 = vmatpush1.msra.mxu0 0.0
      %2411 = vmatprep.subr.mxu0 0.0
      %2412 = vmatpush1.msra.mxu0 0.0
      %2413 = vmatprep.subr.mxu0 0.0
      %2414 = vmatpush1.msra.mxu0 0.0
      %2415 = vmatprep.subr.mxu0 0.0
      %2416 = vmatpush1.msra.mxu0 0.0
      %2417 = vmatprep.subr.mxu0 0.0
      %2418 = vmatpush1.msra.mxu0 0.0
      %2419 = vmatprep.subr.mxu0 0.0
      %2420 = vmatpush1.msra.mxu0 0.0
      %2421 = vmatprep.subr.mxu0 0.0
      %2422 = vmatpush1.msra.mxu0 0.0
      %2423 = vmatprep.subr.mxu0 0.0
      %2424 = vmatpush1.msra.mxu0 0.0
      %2425 = vmatprep.subr.mxu0 0.0
      %2426 = vmatpush1.msra.mxu0 0.0
      %2427 = vmatprep.subr.mxu0 0.0
      %2428 = vmatpush1.msra.mxu0 0.0
      %2429 = vmatprep.subr.mxu0 0.0
      %2430 = vmatpush1.msra.mxu0 0.0
      %2431 = vmatprep.subr.mxu0 0.0
      %2432 = vmatpush1.msra.mxu0 0.0
      %2433 = vmatprep.subr.mxu0 0.0
      %2434 = vmatpush1.msra.mxu0 0.0
      %2435 = vmatprep.subr.mxu0 0.0
      %2436 = vmatpush1.msra.mxu0 0.0
      %2437 = vmatprep.subr.mxu0 0.0
      %2438 = vmatpush1.msra.mxu0 0.0
      %2439 = vmatprep.subr.mxu0 0.0
      %2440 = vmatpush1.msra.mxu0 0.0
      %2441 = vmatprep.subr.mxu0 0.0
      %2442 = vmatpush1.msra.mxu0 0.0
      %2443 = vmatprep.subr.mxu0 0.0
      %2444 = vmatpush1.msra.mxu0 0.0
      %2445 = vmatprep.subr.mxu0 0.0
      %2446 = vmatpush1.msra.mxu0 0.0
      %2447 = vmatprep.subr.mxu0 0.0
      %2448 = vmatpush1.msra.mxu0 0.0
      %2449 = vmatprep.subr.mxu0 0.0
      %2450 = vmatpush1.msra.mxu0 0.0
      %2451 = vmatprep.subr.mxu0 0.0
      %2452 = vmatpush1.msra.mxu0 0.0
      %2453 = vmatprep.subr.mxu0 0.0
      %2454 = vmatpush1.msra.mxu0 0.0
      %2455 = vmatprep.subr.mxu0 0.0
      %2456 = vmatpush1.msra.mxu0 0.0
      %2457 = vmatprep.mubr.f32.mxu0 0.0
      %2458 = vmatmul.mubr.f32.gmra.mrb[0].mxu0 %v2382
      %v2459 = vpop.f32.mrb[0].mxu0
      %v2460 = vadd.f32 0.0, %v2459
      %v2461 = vpop.f32.mrb[0].mxu0
      %2462 = vmatprep.mubr.f32.mxu0 0.0
      %2463 = vmatmul.mubr.f32.gmra.mrb[0].mxu0 %v2385
      %v2464 = vpop.f32.mrb[0].mxu0
      %v2465 = vadd.f32 0.0, %v2464
      %v2466 = vpop.f32.mrb[0].mxu0
      %2467 = vmatprep.mubr.f32.mxu0 0.0
      %2468 = vmatmul.mubr.f32.gmra.mrb[0].mxu0 %v2388
      %v2469 = vpop.f32.mrb[0].mxu0
      %v2470 = vadd.f32 0.0, %v2469
      %v2471 = vpop.f32.mrb[0].mxu0
      %2472 = vmatprep.mubr.f32.mxu0 0.0
      %2473 = vmatmul.mubr.f32.gmra.mrb[0].mxu0 %v2391
      %v2474 = vpop.f32.mrb[0].mxu0
      %v2475 = vadd.f32 0.0, %v2474
      %v2476 = vpop.f32.mrb[0].mxu0
      %2477 = vdwg.mxu0
      %v2478 = vmul.f32 %v2460, %v1759
      %v2479 = vmul.f32 %v2465, %v1764
      %v2480 = vmul.f32 %v2470, %v1769
      %v2481 = vmul.f32 %v2475, %v1774
      %v2482 = vsel %vm1355, %v2478, 0.0
      %v2483 = vsel %vm1355, %v2479, 0.0
      %v2484 = vadd.f32 %v2482, %v2483
      %v2485 = vsel %vm1355, %v2480, 0.0
      %v2486 = vadd.f32 %v2484, %v2485
      %v2487 = vsel %vm1355, %v2481, 0.0
      %v2488 = vadd.f32 %v2486, %v2487
      %v2489 = vrot.slane %v2488, 4
      %v2490 = vadd.f32 %v2488, %v2489
      %v2491 = vrot.slane %v2490, 2
      %v2492 = vadd.f32 %v2490, %v2491
      %v2493 = vrot.slane %v2492, 1
      %v2494 = vadd.f32 %v2492, %v2493
      %v2495 = vmul.f32 %v2494, %v2494
      %v2497 = vsel %vm1355, %v2495, 0
      %2499 = vmatprep.subr.mxu0 0.0
      %2500 = vmatpush1.msra.mxu0 %v1781
      %2501 = vmatprep.subr.mxu0 0.0
      %2502 = vmatpush1.msra.mxu0 %v1782
      %2503 = vmatprep.subr.mxu0 0.0
      %2504 = vmatpush1.msra.mxu0 %v1783
      %2505 = vmatprep.subr.mxu0 0.0
      %2506 = vmatpush1.msra.mxu0 0.0
      %2507 = vmatprep.subr.mxu0 0.0
      %2508 = vmatpush1.msra.mxu0 0.0
      %2509 = vmatprep.subr.mxu0 0.0
      %2510 = vmatpush1.msra.mxu0 0.0
      %2511 = vmatprep.subr.mxu0 0.0
      %2512 = vmatpush1.msra.mxu0 0.0
      %2513 = vmatprep.subr.mxu0 0.0
      %2514 = vmatpush1.msra.mxu0 0.0
      %2515 = vmatprep.subr.mxu0 0.0
      %2516 = vmatpush1.msra.mxu0 0.0
      %2517 = vmatprep.subr.mxu0 0.0
      %2518 = vmatpush1.msra.mxu0 0.0
      %2519 = vmatprep.subr.mxu0 0.0
      %2520 = vmatpush1.msra.mxu0 0.0
      %2521 = vmatprep.subr.mxu0 0.0
      %2522 = vmatpush1.msra.mxu0 0.0
      %2523 = vmatprep.subr.mxu0 0.0
      %2524 = vmatpush1.msra.mxu0 0.0
      %2525 = vmatprep.subr.mxu0 0.0
      %2526 = vmatpush1.msra.mxu0 0.0
      %2527 = vmatprep.subr.mxu0 0.0
      %2528 = vmatpush1.msra.mxu0 0.0
      %2529 = vmatprep.subr.mxu0 0.0
      %2530 = vmatpush1.msra.mxu0 0.0
      %2531 = vmatprep.subr.mxu0 0.0
      %2532 = vmatpush1.msra.mxu0 0.0
      %2533 = vmatprep.subr.mxu0 0.0
      %2534 = vmatpush1.msra.mxu0 0.0
      %2535 = vmatprep.subr.mxu0 0.0
      %2536 = vmatpush1.msra.mxu0 0.0
      %2537 = vmatprep.subr.mxu0 0.0
      %2538 = vmatpush1.msra.mxu0 0.0
      %2539 = vmatprep.subr.mxu0 0.0
      %2540 = vmatpush1.msra.mxu0 0.0
      %2541 = vmatprep.subr.mxu0 0.0
      %2542 = vmatpush1.msra.mxu0 0.0
      %2543 = vmatprep.subr.mxu0 0.0
      %2544 = vmatpush1.msra.mxu0 0.0
      %2545 = vmatprep.subr.mxu0 0.0
      %2546 = vmatpush1.msra.mxu0 0.0
      %2547 = vmatprep.subr.mxu0 0.0
      %2548 = vmatpush1.msra.mxu0 0.0
      %2549 = vmatprep.subr.mxu0 0.0
      %2550 = vmatpush1.msra.mxu0 0.0
      %2551 = vmatprep.subr.mxu0 0.0
      %2552 = vmatpush1.msra.mxu0 0.0
      %2553 = vmatprep.subr.mxu0 0.0
      %2554 = vmatpush1.msra.mxu0 0.0
      %2555 = vmatprep.subr.mxu0 0.0
      %2556 = vmatpush1.msra.mxu0 0.0
      %2557 = vmatprep.subr.mxu0 0.0
      %2558 = vmatpush1.msra.mxu0 0.0
      %2559 = vmatprep.subr.mxu0 0.0
      %2560 = vmatpush1.msra.mxu0 0.0
      %2561 = vmatprep.subr.mxu0 0.0
      %2562 = vmatpush1.msra.mxu0 0.0
      %2563 = vmatprep.mubr.f32.mxu0 0.0
      %2564 = vmatmul.mubr.f32.gmra.mrb[0].mxu0 %v2497
      %v2565 = vpop.f32.mrb[0].mxu0
      %v2566 = vadd.f32 0.0, %v2565
      %v2567 = vpop.f32.mrb[0].mxu0
      %2568 = vdwg.mxu0
      %v2569 = vadd.f32 %v2566, 1.0
      %v2570 = vrcp.pop %v2569
      %v2571 = vmul.f32 %v2566, %v2570
      %v2572 = vmul.f32 %v2494, %v2571
      %v2573 = vadd.f32 %v2566, 1e-09
      %v2574 = vrsqrt.pop %v2573
      %v2575 = vmul.f32 %v2572, %v2574
      %v2576 = vsel %vm1355, %v2575, 0.0
      %2577 = vst [vmem:[%s557] sm:$0x1] %v2576
      %p2578 = scmp.lt.s32.totalorder %s27, 7
      %s2579 = scalar_select %p2578, %s27, 7
      %s2580 = scalar_lea.vmem %s16, %s2579
      // Predicated region
      $region85: #{motif_aware_capnn_forward_batched.1} parent=83 // pred_check
        %p2581 = pneg %p396
      $region86: #{motif_aware_capnn_forward_batched.1} parent=83 // pred_check_branch
        %2583 = sbr.rel (%p2581) target = $region88
      $region87: #{motif_aware_capnn_forward_batched.1} parent=83 // pred_region
        _
      $region88: #{motif_aware_capnn_forward_batched.1} parent=83 // pred_fallthru
        _
    $region84: #{motif_aware_capnn_forward_batched.1} parent=5 // pred_fallthru
      _
    %p2584 = scmp.le.s32.totalorder 2, %s22
    // Predicated region
    $region89: #{motif_aware_capnn_forward_batched.1} parent=5 // pred_check
      %p2585 = pneg %p2584
    $region90: #{motif_aware_capnn_forward_batched.1} parent=5 // pred_check_branch
      %2587 = sbr.rel (%p2585) target = $region92
    $region91: #{motif_aware_capnn_forward_batched.1} parent=5 // pred_region
      %s2588 = ssub.s32 %s22, 2
      // Predicated region
      $region93: #{motif_aware_capnn_forward_batched.1} parent=91 // pred_check
        %p2589 = pneg %p402
      $region94: #{motif_aware_capnn_forward_batched.1} parent=91 // pred_check_branch
        %2591 = sbr.rel (%p2589) target = $region96
      $region95: #{motif_aware_capnn_forward_batched.1} parent=91 // pred_region
        %p2592 = scmp.lt.s32.totalorder %s28, 7
        %s2593 = scalar_select %p2592, %s28, 7
        %s2594 = scalar_lea.vmem %s16, %s2593
      $region96: #{motif_aware_capnn_forward_batched.1} parent=91 // pred_fallthru
        _
    $region92: #{motif_aware_capnn_forward_batched.1} parent=5 // pred_fallthru
      _
  $region6: #{motif_aware_capnn_forward_batched.1} parent=0 // loop_footer
    %s26 = sadd.s32 1, %s22
  $region7: #{motif_aware_capnn_forward_batched.1} parent=0 // loop_footer_branch
    %21 = sbr.rel target = $region3
  $region8: #{motif_aware_capnn_forward_batched.1} parent=0 // loop_exit
    _

</llo_original>
